<compile_context>
chip_gen: v6e
topology: v6e:2x2x1
jax: 0.10.0
libtpu: 0.0.40
codegen_flags: <defaults>
</compile_context>

<pallas_src>
from itertools import combinations

import numpy as np
import jax
import jax.numpy as jnp
from jax import lax
from jax.experimental import pallas as pl
from jax.experimental.pallas import tpu as pltpu


# ----------------------------------------------------------------------------
# Glue: deterministic construction of the RBS basis unitaries (RBS_Unitaries).
# ----------------------------------------------------------------------------
def rbs_unitaries(n_qubits, k, list_gates):
    """For each qubit pair (a, b) build (U0, U1, U2) in the Hamming-weight-k
    basis of n_qubits qubits, such that the RBS gate is
    U(theta) = U0*cos(theta) + U1*sin(theta) + U2."""
    basis = list(combinations(range(n_qubits), k))
    D = len(basis)
    index = {s: i for i, s in enumerate(basis)}
    out = {}
    for (a, b) in list_gates:
        U0 = np.zeros((D, D), np.float32)   # cos part (diag on "active" states)
        U1 = np.zeros((D, D), np.float32)   # sin part (antisymmetric coupling)
        U2 = np.zeros((D, D), np.float32)   # identity on "inactive" states
        for s in basis:
            sset = set(s)
            i = index[s]
            in_a, in_b = (a in sset), (b in sset)
            if in_a != in_b:
                U0[i, i] = 1.0
                if in_a:
                    t = tuple(sorted((sset - {a}) | {b}))
                    U1[i, index[t]] = 1.0
                else:
                    t = tuple(sorted((sset - {b}) | {a}))
                    U1[i, index[t]] = -1.0
            else:
                U2[i, i] = 1.0
        out[(a, b)] = (U0, U1, U2)
    return out, D


# ----------------------------------------------------------------------------
# Pallas kernel: fuse all gates into the circuit unitary W, then one sandwich
# rho' = W @ rho @ W^T per batch slab.  Everything VMEM/SMEM resident.
# ----------------------------------------------------------------------------
def _dense_rbs_kernel(c_ref, s_ref, u0_ref, u1_ref, u2_ref, rho_ref, out_ref):
    """c_ref, s_ref : (G,)      cos/sin of the gate angles        (f32, SMEM)
       u0/u1/u2_ref : (G, D, D) RBS basis matrices                (f32, VMEM)
       rho_ref      : (B, D, D) initial density operators         (f32, VMEM)
       out_ref      : (B, D, D) final density operators           (f32, VMEM)"""
    G = u0_ref.shape[0]
    B = rho_ref.shape[0]

    def fuse(g):
        # U_g = U0_g*cos(theta_g) + U1_g*sin(theta_g) + U2_g
        # (VPU FMAs - free filler under the MXU-latency bottleneck).
        return u0_ref[g] * c_ref[g] + u1_ref[g] * s_ref[g] + u2_ref[g]

    # W = U_{G-1} @ ... @ U_1 @ U_0 : (G-1) dependent tiny matmuls.
    def body(g, w):
        return jnp.dot(fuse(g), w, preferred_element_type=jnp.float32)

    w = lax.fori_loop(1, G, body, fuse(0),
                      unroll=min(8, max(G - 1, 1)))   # cap unroll for large G

    # rho'_b = W @ (rho_b @ W^T): right multiply contracts last axes of both
    # operands (no materialized W^T, no transpose op), then left multiply.
    for b in range(B):
        y = lax.dot_general(rho_ref[b], w, (((1,), (1,)), ((), ())),
                            preferred_element_type=jnp.float32)   # rho_b @ W^T
        out_ref[b] = jnp.dot(w, y, preferred_element_type=jnp.float32)


def dense_rbs_density_3d(rho, u0s, u1s, u2s, angles):
    """rho: (B, D, D); u*s: (G, D, D) f32; angles: (G,) f32."""
    B, D, _ = rho.shape
    G = int(angles.shape[0])
    rho = rho.astype(jnp.float32)           # module does input_state.float()
    if G == 0:                              # empty circuit -> identity map
        return rho

    # Only the tiny (G,) cos/sin vectors are computed outside the kernel
    # (avoids relying on in-kernel transcendental sin/cos lowering); the
    # per-gate (D, D) FMA fusion and the circuit product happen in-kernel.
    c = jnp.cos(angles).astype(jnp.float32)
    s = jnp.sin(angles).astype(jnp.float32)

    # Total padded VMEM footprint: 3*(G,32,128) + 2*(B,32,128) f32 << 1 MiB,
    # resident on every TPU generation (incl. v7x's 64 MiB VMEM); no
    # vmem_limit_bytes override needed.  If D or G scale up, stream the gate
    # axis via a grid dimension / emit_pipeline instead.
    return pl.pallas_call(
        _dense_rbs_kernel,
        out_shape=jax.ShapeDtypeStruct((B, D, D), jnp.float32),
        in_specs=[
            pl.BlockSpec(memory_space=pltpu.MemorySpace.SMEM),   # cos(theta)
            pl.BlockSpec(memory_space=pltpu.MemorySpace.SMEM),   # sin(theta)
            pl.BlockSpec(memory_space=pltpu.MemorySpace.VMEM),   # U0 stack
            pl.BlockSpec(memory_space=pltpu.MemorySpace.VMEM),   # U1 stack
            pl.BlockSpec(memory_space=pltpu.MemorySpace.VMEM),   # U2 stack
            pl.BlockSpec(memory_space=pltpu.MemorySpace.VMEM),   # rho
        ],
        out_specs=pl.BlockSpec(memory_space=pltpu.MemorySpace.VMEM),
    )(c, s,
      u0s.astype(jnp.float32), u1s.astype(jnp.float32), u2s.astype(jnp.float32),
      rho)


# ----------------------------------------------------------------------------
# Pure-JAX reference (mirrors the PyTorch forward exactly, gate by gate).
# ----------------------------------------------------------------------------
def dense_rbs_density_3d_ref(rho, u0s, u1s, u2s, angles):
    state = rho.astype(jnp.float32)
    for g in range(angles.shape[0]):
        U = u0s[g] * jnp.cos(angles[g]) + u1s[g] * jnp.sin(angles[g]) + u2s[g]
        state = jnp.einsum('ij,bjk,lk->bil', U, state, U)
    return state


if __name__ == "__main__":
    # Small config consistent with the module: I=3, J=2, k=2
    # -> n_qubits = 2*I + J = 8, D = binom(8, 2) = 28.
    I, J, k = 3, 2, 2
    n_qubits = I + I + J
    list_gates = [(0, 1), (2, 3), (4, 5), (6, 7),
                  (1, 2), (3, 4), (5, 6), (0, 7)]
    G = len(list_gates)
    B = 2

    unitaries, D = rbs_unitaries(n_qubits, k, list_gates)
    u0s = jnp.asarray(np.stack([unitaries[g][0] for g in list_gates]))
    u1s = jnp.asarray(np.stack([unitaries[g][1] for g in list_gates]))
    u2s = jnp.asarray(np.stack([unitaries[g][2] for g in list_gates]))

    key = jax.random.PRNGKey(0)
    k_ang, k_rho = jax.random.split(key)
    # nn.Parameter(torch.rand(())) per gate -> uniform [0, 1) angles.
    angles = jax.random.uniform(k_ang, (G,), dtype=jnp.float32)

    # Deterministic symmetric PSD "density operator" input (B, D, D), trace 1.
    A = jax.random.normal(k_rho, (B, D, D), dtype=jnp.float32)
    rho = jnp.einsum('bij,bkj->bik', A, A)
    rho = rho / jnp.trace(rho, axis1=1, axis2=2)[:, None, None]
    rho = rho.astype(jnp.float32)

    ref = dense_rbs_density_3d_ref(rho, u0s, u1s, u2s, angles)
    ref = jax.block_until_ready(ref)

    fwd = jax.jit(dense_rbs_density_3d)
    out = fwd(rho, u0s, u1s, u2s, angles)
    out = jax.block_until_ready(out)

    # Tolerance covers the (benign) rounding-order change from collapsing the
    # gate chain into the circuit unitary W.
    np.testing.assert_allclose(np.asarray(out), np.asarray(ref),
                               rtol=1e-4, atol=2e-5)
    print("KERNEL_OK")
</pallas_src>

<mosaic_0001>
module attributes {stable_mosaic.version = 11 : i64} {
  func.func @_dense_rbs_kernel(%arg0: memref<8xf32, #tpu.memory_space<smem>>, %arg1: memref<8xf32, #tpu.memory_space<smem>>, %arg2: memref<8x28x28xf32, #tpu.memory_space<vmem>>, %arg3: memref<8x28x28xf32, #tpu.memory_space<vmem>>, %arg4: memref<8x28x28xf32, #tpu.memory_space<vmem>>, %arg5: memref<2x28x28xf32, #tpu.memory_space<vmem>>, %arg6: memref<2x28x28xf32, #tpu.memory_space<vmem>>) attributes {dimension_semantics = [], scalar_prefetch = 0 : i64, scratch_operands = 0 : i64, tpu.core_type = #tpu.core_type<tc>} {
    %c0 = arith.constant 0 : index
    %c0_0 = arith.constant 0 : index
    %c0_1 = arith.constant 0 : index
    %0 = vector.load %arg2[%c0, %c0_0, %c0_1] : memref<8x28x28xf32, #tpu.memory_space<vmem>>, vector<1x28x28xf32>
    %1 = vector.shape_cast %0 : vector<1x28x28xf32> to vector<28x28xf32>
    %c0_2 = arith.constant 0 : index
    %2 = memref.load %arg0[%c0_2] : memref<8xf32, #tpu.memory_space<smem>>
    %3 = vector.broadcast %2 : f32 to vector<28x28xf32>
    %4 = arith.mulf %1, %3 : vector<28x28xf32>
    %c0_3 = arith.constant 0 : index
    %c0_4 = arith.constant 0 : index
    %c0_5 = arith.constant 0 : index
    %5 = vector.load %arg3[%c0_3, %c0_4, %c0_5] : memref<8x28x28xf32, #tpu.memory_space<vmem>>, vector<1x28x28xf32>
    %6 = vector.shape_cast %5 : vector<1x28x28xf32> to vector<28x28xf32>
    %c0_6 = arith.constant 0 : index
    %7 = memref.load %arg1[%c0_6] : memref<8xf32, #tpu.memory_space<smem>>
    %8 = vector.broadcast %7 : f32 to vector<28x28xf32>
    %9 = arith.mulf %6, %8 : vector<28x28xf32>
    %10 = arith.addf %4, %9 : vector<28x28xf32>
    %c0_7 = arith.constant 0 : index
    %c0_8 = arith.constant 0 : index
    %c0_9 = arith.constant 0 : index
    %11 = vector.load %arg4[%c0_7, %c0_8, %c0_9] : memref<8x28x28xf32, #tpu.memory_space<vmem>>, vector<1x28x28xf32>
    %12 = vector.shape_cast %11 : vector<1x28x28xf32> to vector<28x28xf32>
    %13 = arith.addf %10, %12 : vector<28x28xf32>
    %c1_i32 = arith.constant 1 : i32
    %14 = arith.index_cast %c1_i32 : i32 to index
    %c0_10 = arith.constant 0 : index
    %c0_11 = arith.constant 0 : index
    %15 = vector.load %arg2[%14, %c0_10, %c0_11] : memref<8x28x28xf32, #tpu.memory_space<vmem>>, vector<1x28x28xf32>
    %16 = vector.shape_cast %15 : vector<1x28x28xf32> to vector<28x28xf32>
    %17 = arith.index_cast %c1_i32 : i32 to index
    %18 = memref.load %arg0[%17] : memref<8xf32, #tpu.memory_space<smem>>
    %19 = vector.broadcast %18 : f32 to vector<28x28xf32>
    %20 = arith.mulf %16, %19 : vector<28x28xf32>
    %21 = arith.index_cast %c1_i32 : i32 to index
    %c0_12 = arith.constant 0 : index
    %c0_13 = arith.constant 0 : index
    %22 = vector.load %arg3[%21, %c0_12, %c0_13] : memref<8x28x28xf32, #tpu.memory_space<vmem>>, vector<1x28x28xf32>
    %23 = vector.shape_cast %22 : vector<1x28x28xf32> to vector<28x28xf32>
    %24 = arith.index_cast %c1_i32 : i32 to index
    %25 = memref.load %arg1[%24] : memref<8xf32, #tpu.memory_space<smem>>
    %26 = vector.broadcast %25 : f32 to vector<28x28xf32>
    %27 = arith.mulf %23, %26 : vector<28x28xf32>
    %28 = arith.addf %20, %27 : vector<28x28xf32>
    %29 = arith.index_cast %c1_i32 : i32 to index
    %c0_14 = arith.constant 0 : index
    %c0_15 = arith.constant 0 : index
    %30 = vector.load %arg4[%29, %c0_14, %c0_15] : memref<8x28x28xf32, #tpu.memory_space<vmem>>, vector<1x28x28xf32>
    %31 = vector.shape_cast %30 : vector<1x28x28xf32> to vector<28x28xf32>
    %32 = arith.addf %28, %31 : vector<28x28xf32>
    %cst = arith.constant dense<0.000000e+00> : vector<28x28xf32>
    %33 = tpu.matmul %32, %13, %cst {dimension_numbers = #tpu.dot_dimension_numbers<[1], [0], [0], [1], [0, 0, 1, 1], [], []>} : vector<28x28xf32>, vector<28x28xf32>, vector<28x28xf32> -> vector<28x28xf32>
    %c2_i32 = arith.constant 2 : i32
    %34 = arith.index_cast %c2_i32 : i32 to index
    %c0_16 = arith.constant 0 : index
    %c0_17 = arith.constant 0 : index
    %35 = vector.load %arg2[%34, %c0_16, %c0_17] : memref<8x28x28xf32, #tpu.memory_space<vmem>>, vector<1x28x28xf32>
    %36 = vector.shape_cast %35 : vector<1x28x28xf32> to vector<28x28xf32>
    %37 = arith.index_cast %c2_i32 : i32 to index
    %38 = memref.load %arg0[%37] : memref<8xf32, #tpu.memory_space<smem>>
    %39 = vector.broadcast %38 : f32 to vector<28x28xf32>
    %40 = arith.mulf %36, %39 : vector<28x28xf32>
    %41 = arith.index_cast %c2_i32 : i32 to index
    %c0_18 = arith.constant 0 : index
    %c0_19 = arith.constant 0 : index
    %42 = vector.load %arg3[%41, %c0_18, %c0_19] : memref<8x28x28xf32, #tpu.memory_space<vmem>>, vector<1x28x28xf32>
    %43 = vector.shape_cast %42 : vector<1x28x28xf32> to vector<28x28xf32>
    %44 = arith.index_cast %c2_i32 : i32 to index
    %45 = memref.load %arg1[%44] : memref<8xf32, #tpu.memory_space<smem>>
    %46 = vector.broadcast %45 : f32 to vector<28x28xf32>
    %47 = arith.mulf %43, %46 : vector<28x28xf32>
    %48 = arith.addf %40, %47 : vector<28x28xf32>
    %49 = arith.index_cast %c2_i32 : i32 to index
    %c0_20 = arith.constant 0 : index
    %c0_21 = arith.constant 0 : index
    %50 = vector.load %arg4[%49, %c0_20, %c0_21] : memref<8x28x28xf32, #tpu.memory_space<vmem>>, vector<1x28x28xf32>
    %51 = vector.shape_cast %50 : vector<1x28x28xf32> to vector<28x28xf32>
    %52 = arith.addf %48, %51 : vector<28x28xf32>
    %cst_22 = arith.constant dense<0.000000e+00> : vector<28x28xf32>
    %53 = tpu.matmul %52, %33, %cst_22 {dimension_numbers = #tpu.dot_dimension_numbers<[1], [0], [0], [1], [0, 0, 1, 1], [], []>} : vector<28x28xf32>, vector<28x28xf32>, vector<28x28xf32> -> vector<28x28xf32>
    %c3_i32 = arith.constant 3 : i32
    %54 = arith.index_cast %c3_i32 : i32 to index
    %c0_23 = arith.constant 0 : index
    %c0_24 = arith.constant 0 : index
    %55 = vector.load %arg2[%54, %c0_23, %c0_24] : memref<8x28x28xf32, #tpu.memory_space<vmem>>, vector<1x28x28xf32>
    %56 = vector.shape_cast %55 : vector<1x28x28xf32> to vector<28x28xf32>
    %57 = arith.index_cast %c3_i32 : i32 to index
    %58 = memref.load %arg0[%57] : memref<8xf32, #tpu.memory_space<smem>>
    %59 = vector.broadcast %58 : f32 to vector<28x28xf32>
    %60 = arith.mulf %56, %59 : vector<28x28xf32>
    %61 = arith.index_cast %c3_i32 : i32 to index
    %c0_25 = arith.constant 0 : index
    %c0_26 = arith.constant 0 : index
    %62 = vector.load %arg3[%61, %c0_25, %c0_26] : memref<8x28x28xf32, #tpu.memory_space<vmem>>, vector<1x28x28xf32>
    %63 = vector.shape_cast %62 : vector<1x28x28xf32> to vector<28x28xf32>
    %64 = arith.index_cast %c3_i32 : i32 to index
    %65 = memref.load %arg1[%64] : memref<8xf32, #tpu.memory_space<smem>>
    %66 = vector.broadcast %65 : f32 to vector<28x28xf32>
    %67 = arith.mulf %63, %66 : vector<28x28xf32>
    %68 = arith.addf %60, %67 : vector<28x28xf32>
    %69 = arith.index_cast %c3_i32 : i32 to index
    %c0_27 = arith.constant 0 : index
    %c0_28 = arith.constant 0 : index
    %70 = vector.load %arg4[%69, %c0_27, %c0_28] : memref<8x28x28xf32, #tpu.memory_space<vmem>>, vector<1x28x28xf32>
    %71 = vector.shape_cast %70 : vector<1x28x28xf32> to vector<28x28xf32>
    %72 = arith.addf %68, %71 : vector<28x28xf32>
    %cst_29 = arith.constant dense<0.000000e+00> : vector<28x28xf32>
    %73 = tpu.matmul %72, %53, %cst_29 {dimension_numbers = #tpu.dot_dimension_numbers<[1], [0], [0], [1], [0, 0, 1, 1], [], []>} : vector<28x28xf32>, vector<28x28xf32>, vector<28x28xf32> -> vector<28x28xf32>
    %c4_i32 = arith.constant 4 : i32
    %74 = arith.index_cast %c4_i32 : i32 to index
    %c0_30 = arith.constant 0 : index
    %c0_31 = arith.constant 0 : index
    %75 = vector.load %arg2[%74, %c0_30, %c0_31] : memref<8x28x28xf32, #tpu.memory_space<vmem>>, vector<1x28x28xf32>
    %76 = vector.shape_cast %75 : vector<1x28x28xf32> to vector<28x28xf32>
    %77 = arith.index_cast %c4_i32 : i32 to index
    %78 = memref.load %arg0[%77] : memref<8xf32, #tpu.memory_space<smem>>
    %79 = vector.broadcast %78 : f32 to vector<28x28xf32>
    %80 = arith.mulf %76, %79 : vector<28x28xf32>
    %81 = arith.index_cast %c4_i32 : i32 to index
    %c0_32 = arith.constant 0 : index
    %c0_33 = arith.constant 0 : index
    %82 = vector.load %arg3[%81, %c0_32, %c0_33] : memref<8x28x28xf32, #tpu.memory_space<vmem>>, vector<1x28x28xf32>
    %83 = vector.shape_cast %82 : vector<1x28x28xf32> to vector<28x28xf32>
    %84 = arith.index_cast %c4_i32 : i32 to index
    %85 = memref.load %arg1[%84] : memref<8xf32, #tpu.memory_space<smem>>
    %86 = vector.broadcast %85 : f32 to vector<28x28xf32>
    %87 = arith.mulf %83, %86 : vector<28x28xf32>
    %88 = arith.addf %80, %87 : vector<28x28xf32>
    %89 = arith.index_cast %c4_i32 : i32 to index
    %c0_34 = arith.constant 0 : index
    %c0_35 = arith.constant 0 : index
    %90 = vector.load %arg4[%89, %c0_34, %c0_35] : memref<8x28x28xf32, #tpu.memory_space<vmem>>, vector<1x28x28xf32>
    %91 = vector.shape_cast %90 : vector<1x28x28xf32> to vector<28x28xf32>
    %92 = arith.addf %88, %91 : vector<28x28xf32>
    %cst_36 = arith.constant dense<0.000000e+00> : vector<28x28xf32>
    %93 = tpu.matmul %92, %73, %cst_36 {dimension_numbers = #tpu.dot_dimension_numbers<[1], [0], [0], [1], [0, 0, 1, 1], [], []>} : vector<28x28xf32>, vector<28x28xf32>, vector<28x28xf32> -> vector<28x28xf32>
    %c5_i32 = arith.constant 5 : i32
    %94 = arith.index_cast %c5_i32 : i32 to index
    %c0_37 = arith.constant 0 : index
    %c0_38 = arith.constant 0 : index
    %95 = vector.load %arg2[%94, %c0_37, %c0_38] : memref<8x28x28xf32, #tpu.memory_space<vmem>>, vector<1x28x28xf32>
    %96 = vector.shape_cast %95 : vector<1x28x28xf32> to vector<28x28xf32>
    %97 = arith.index_cast %c5_i32 : i32 to index
    %98 = memref.load %arg0[%97] : memref<8xf32, #tpu.memory_space<smem>>
    %99 = vector.broadcast %98 : f32 to vector<28x28xf32>
    %100 = arith.mulf %96, %99 : vector<28x28xf32>
    %101 = arith.index_cast %c5_i32 : i32 to index
    %c0_39 = arith.constant 0 : index
    %c0_40 = arith.constant 0 : index
    %102 = vector.load %arg3[%101, %c0_39, %c0_40] : memref<8x28x28xf32, #tpu.memory_space<vmem>>, vector<1x28x28xf32>
    %103 = vector.shape_cast %102 : vector<1x28x28xf32> to vector<28x28xf32>
    %104 = arith.index_cast %c5_i32 : i32 to index
    %105 = memref.load %arg1[%104] : memref<8xf32, #tpu.memory_space<smem>>
    %106 = vector.broadcast %105 : f32 to vector<28x28xf32>
    %107 = arith.mulf %103, %106 : vector<28x28xf32>
    %108 = arith.addf %100, %107 : vector<28x28xf32>
    %109 = arith.index_cast %c5_i32 : i32 to index
    %c0_41 = arith.constant 0 : index
    %c0_42 = arith.constant 0 : index
    %110 = vector.load %arg4[%109, %c0_41, %c0_42] : memref<8x28x28xf32, #tpu.memory_space<vmem>>, vector<1x28x28xf32>
    %111 = vector.shape_cast %110 : vector<1x28x28xf32> to vector<28x28xf32>
    %112 = arith.addf %108, %111 : vector<28x28xf32>
    %cst_43 = arith.constant dense<0.000000e+00> : vector<28x28xf32>
    %113 = tpu.matmul %112, %93, %cst_43 {dimension_numbers = #tpu.dot_dimension_numbers<[1], [0], [0], [1], [0, 0, 1, 1], [], []>} : vector<28x28xf32>, vector<28x28xf32>, vector<28x28xf32> -> vector<28x28xf32>
    %c6_i32 = arith.constant 6 : i32
    %114 = arith.index_cast %c6_i32 : i32 to index
    %c0_44 = arith.constant 0 : index
    %c0_45 = arith.constant 0 : index
    %115 = vector.load %arg2[%114, %c0_44, %c0_45] : memref<8x28x28xf32, #tpu.memory_space<vmem>>, vector<1x28x28xf32>
    %116 = vector.shape_cast %115 : vector<1x28x28xf32> to vector<28x28xf32>
    %117 = arith.index_cast %c6_i32 : i32 to index
    %118 = memref.load %arg0[%117] : memref<8xf32, #tpu.memory_space<smem>>
    %119 = vector.broadcast %118 : f32 to vector<28x28xf32>
    %120 = arith.mulf %116, %119 : vector<28x28xf32>
    %121 = arith.index_cast %c6_i32 : i32 to index
    %c0_46 = arith.constant 0 : index
    %c0_47 = arith.constant 0 : index
    %122 = vector.load %arg3[%121, %c0_46, %c0_47] : memref<8x28x28xf32, #tpu.memory_space<vmem>>, vector<1x28x28xf32>
    %123 = vector.shape_cast %122 : vector<1x28x28xf32> to vector<28x28xf32>
    %124 = arith.index_cast %c6_i32 : i32 to index
    %125 = memref.load %arg1[%124] : memref<8xf32, #tpu.memory_space<smem>>
    %126 = vector.broadcast %125 : f32 to vector<28x28xf32>
    %127 = arith.mulf %123, %126 : vector<28x28xf32>
    %128 = arith.addf %120, %127 : vector<28x28xf32>
    %129 = arith.index_cast %c6_i32 : i32 to index
    %c0_48 = arith.constant 0 : index
    %c0_49 = arith.constant 0 : index
    %130 = vector.load %arg4[%129, %c0_48, %c0_49] : memref<8x28x28xf32, #tpu.memory_space<vmem>>, vector<1x28x28xf32>
    %131 = vector.shape_cast %130 : vector<1x28x28xf32> to vector<28x28xf32>
    %132 = arith.addf %128, %131 : vector<28x28xf32>
    %cst_50 = arith.constant dense<0.000000e+00> : vector<28x28xf32>
    %133 = tpu.matmul %132, %113, %cst_50 {dimension_numbers = #tpu.dot_dimension_numbers<[1], [0], [0], [1], [0, 0, 1, 1], [], []>} : vector<28x28xf32>, vector<28x28xf32>, vector<28x28xf32> -> vector<28x28xf32>
    %c7_i32 = arith.constant 7 : i32
    %134 = arith.index_cast %c7_i32 : i32 to index
    %c0_51 = arith.constant 0 : index
    %c0_52 = arith.constant 0 : index
    %135 = vector.load %arg2[%134, %c0_51, %c0_52] : memref<8x28x28xf32, #tpu.memory_space<vmem>>, vector<1x28x28xf32>
    %136 = vector.shape_cast %135 : vector<1x28x28xf32> to vector<28x28xf32>
    %137 = arith.index_cast %c7_i32 : i32 to index
    %138 = memref.load %arg0[%137] : memref<8xf32, #tpu.memory_space<smem>>
    %139 = vector.broadcast %138 : f32 to vector<28x28xf32>
    %140 = arith.mulf %136, %139 : vector<28x28xf32>
    %141 = arith.index_cast %c7_i32 : i32 to index
    %c0_53 = arith.constant 0 : index
    %c0_54 = arith.constant 0 : index
    %142 = vector.load %arg3[%141, %c0_53, %c0_54] : memref<8x28x28xf32, #tpu.memory_space<vmem>>, vector<1x28x28xf32>
    %143 = vector.shape_cast %142 : vector<1x28x28xf32> to vector<28x28xf32>
    %144 = arith.index_cast %c7_i32 : i32 to index
    %145 = memref.load %arg1[%144] : memref<8xf32, #tpu.memory_space<smem>>
    %146 = vector.broadcast %145 : f32 to vector<28x28xf32>
    %147 = arith.mulf %143, %146 : vector<28x28xf32>
    %148 = arith.addf %140, %147 : vector<28x28xf32>
    %149 = arith.index_cast %c7_i32 : i32 to index
    %c0_55 = arith.constant 0 : index
    %c0_56 = arith.constant 0 : index
    %150 = vector.load %arg4[%149, %c0_55, %c0_56] : memref<8x28x28xf32, #tpu.memory_space<vmem>>, vector<1x28x28xf32>
    %151 = vector.shape_cast %150 : vector<1x28x28xf32> to vector<28x28xf32>
    %152 = arith.addf %148, %151 : vector<28x28xf32>
    %cst_57 = arith.constant dense<0.000000e+00> : vector<28x28xf32>
    %153 = tpu.matmul %152, %133, %cst_57 {dimension_numbers = #tpu.dot_dimension_numbers<[1], [0], [0], [1], [0, 0, 1, 1], [], []>} : vector<28x28xf32>, vector<28x28xf32>, vector<28x28xf32> -> vector<28x28xf32>
    %c7_i32_58 = arith.constant 7 : i32
    %c0_59 = arith.constant 0 : index
    %c0_60 = arith.constant 0 : index
    %c0_61 = arith.constant 0 : index
    %154 = vector.load %arg5[%c0_59, %c0_60, %c0_61] : memref<2x28x28xf32, #tpu.memory_space<vmem>>, vector<1x28x28xf32>
    %155 = vector.shape_cast %154 : vector<1x28x28xf32> to vector<28x28xf32>
    %cst_62 = arith.constant dense<0.000000e+00> : vector<28x28xf32>
    %156 = tpu.matmul %155, %153, %cst_62 {dimension_numbers = #tpu.dot_dimension_numbers<[1], [1], [0], [0], [0, 0, 1, 0], [], []>} : vector<28x28xf32>, vector<28x28xf32>, vector<28x28xf32> -> vector<28x28xf32>
    %cst_63 = arith.constant dense<0.000000e+00> : vector<28x28xf32>
    %157 = tpu.matmul %153, %156, %cst_63 {dimension_numbers = #tpu.dot_dimension_numbers<[1], [0], [0], [1], [0, 0, 1, 1], [], []>} : vector<28x28xf32>, vector<28x28xf32>, vector<28x28xf32> -> vector<28x28xf32>
    %c0_64 = arith.constant 0 : index
    %c0_65 = arith.constant 0 : index
    %c0_66 = arith.constant 0 : index
    %158 = vector.load %arg6[%c0_64, %c0_65, %c0_66] : memref<2x28x28xf32, #tpu.memory_space<vmem>>, vector<1x28x28xf32>
    %159 = vector.shape_cast %158 : vector<1x28x28xf32> to vector<28x28xf32>
    %160 = vector.shape_cast %157 : vector<28x28xf32> to vector<1x28x28xf32>
    tpu.vector_store %arg6[%c0_64, %c0_65, %c0_66], %160 {strides = array<i32>} : memref<2x28x28xf32, #tpu.memory_space<vmem>>, vector<1x28x28xf32>,
    %c1 = arith.constant 1 : index
    %c0_67 = arith.constant 0 : index
    %c0_68 = arith.constant 0 : index
    %161 = vector.load %arg5[%c1, %c0_67, %c0_68] : memref<2x28x28xf32, #tpu.memory_space<vmem>>, vector<1x28x28xf32>
    %162 = vector.shape_cast %161 : vector<1x28x28xf32> to vector<28x28xf32>
    %cst_69 = arith.constant dense<0.000000e+00> : vector<28x28xf32>
    %163 = tpu.matmul %162, %153, %cst_69 {dimension_numbers = #tpu.dot_dimension_numbers<[1], [1], [0], [0], [0, 0, 1, 0], [], []>} : vector<28x28xf32>, vector<28x28xf32>, vector<28x28xf32> -> vector<28x28xf32>
    %cst_70 = arith.constant dense<0.000000e+00> : vector<28x28xf32>
    %164 = tpu.matmul %153, %163, %cst_70 {dimension_numbers = #tpu.dot_dimension_numbers<[1], [0], [0], [1], [0, 0, 1, 1], [], []>} : vector<28x28xf32>, vector<28x28xf32>, vector<28x28xf32> -> vector<28x28xf32>
    %c1_71 = arith.constant 1 : index
    %c0_72 = arith.constant 0 : index
    %c0_73 = arith.constant 0 : index
    %165 = vector.load %arg6[%c1_71, %c0_72, %c0_73] : memref<2x28x28xf32, #tpu.memory_space<vmem>>, vector<1x28x28xf32>
    %166 = vector.shape_cast %165 : vector<1x28x28xf32> to vector<28x28xf32>
    %167 = vector.shape_cast %164 : vector<28x28xf32> to vector<1x28x28xf32>
    tpu.vector_store %arg6[%c1_71, %c0_72, %c0_73], %167 {strides = array<i32>} : memref<2x28x28xf32, #tpu.memory_space<vmem>>, vector<1x28x28xf32>,
    return
  }
}

</mosaic_0001>

<llo_original>
// kernel: dense_rbs_density_3d.1
$region0: #{dense_rbs_density_3d.1}
  #allocation0 [shape = 'u32[]', space=smem, size = 0x4, offset = 0x4, fixed_abs, tag = 'smem constant byte address 0x4 - core index']
  #allocation1 [shape = 'u32[144,128]{1,0:T(1,128)}', space=vmem, size = 0x12000, scoped, tag = 'internal scratch']
  %s0 = inlined_call_operand.vmem [shape: f32[8], index: 0, kind: input, shape index: {}]
  %s1 = inlined_call_operand.vmem [shape: f32[8], index: 1, kind: input, shape index: {}]
  %s2 = inlined_call_operand.vmem [shape: f32[8,28,28], index: 2, kind: input, shape index: {}]
  %s3 = inlined_call_operand.vmem [shape: f32[8,28,28], index: 3, kind: input, shape index: {}]
  %s4 = inlined_call_operand.vmem [shape: f32[8,28,28], index: 4, kind: input, shape index: {}]
  %s5 = inlined_call_operand.vmem [shape: f32[2,28,28], index: 5, kind: input, shape index: {}]
  %s6 = inlined_call_operand.vmem [shape: f32[2,28,28], index: 6, kind: output, shape index: {}]
  %s7 = sld [smem:[#allocation0]]
  $region42: #{dense_rbs_density_3d.1} parent=0
    _
  %s9 = ssub.s32 1, %s7
  %s10 = scalar_select 0, %s9, %s7
  $region1: #{dense_rbs_density_3d.1} parent=0
    #allocation2 [shape = 'u8[512]{0}', space=smem, size = 0x200, scoped, tag = 'input window, operand 0, single buffered']
    #allocation3 [shape = 's32[1]{0}', space=sflag, size = 0x4, scoped, tag = 'scoped memory for dense_rbs_density_3d.1']
    #allocation4 [shape = 'u8[512]{0}', space=smem, size = 0x200, scoped, tag = 'input window, operand 1, single buffered']
    #allocation5 [shape = 's32[1]{0}', space=sflag, size = 0x4, scoped, tag = 'scoped memory for dense_rbs_density_3d.1']
    %11 = vsyncpa [#allocation3], 0
    %12 = vsyncpa [#allocation5], 0
    // Predicated region
    $region2: #{dense_rbs_density_3d.1} parent=1 // pred_check
      _
    $region3: #{dense_rbs_density_3d.1} parent=1 // pred_check_branch
      %14 = sbr.rel (0) target = $region5
    $region4: #{dense_rbs_density_3d.1} parent=1 // pred_region
      %s16 = ssub.s32 16, 16
      %17 = vsyncadd [#allocation3], %s16
      %s19 = sshll.u32 %s0, 4
      %s20 = int_to_ptr.vmem [resolvable:$true] %s19
      %22 = dma.vmem_to_smem %s20, 16, [#allocation2], [#allocation3]
    $region5: #{dense_rbs_density_3d.1} parent=1 // pred_fallthru
      _
    // Predicated region
    $region6: #{dense_rbs_density_3d.1} parent=1 // pred_check
      _
    $region7: #{dense_rbs_density_3d.1} parent=1 // pred_check_branch
      %24 = sbr.rel (0) target = $region9
    $region8: #{dense_rbs_density_3d.1} parent=1 // pred_region
      %s26 = ssub.s32 16, 16
      %27 = vsyncadd [#allocation5], %s26
      %s29 = sshll.u32 %s1, 4
      %s30 = int_to_ptr.vmem [resolvable:$true] %s29
      %32 = dma.vmem_to_smem %s30, 16, [#allocation4], [#allocation5]
    $region9: #{dense_rbs_density_3d.1} parent=1 // pred_fallthru
      _
    // Predicated region
    $region10: #{dense_rbs_density_3d.1} parent=1 // pred_check
      _
    $region11: #{dense_rbs_density_3d.1} parent=1 // pred_check_branch
      %34 = sbr.rel (0) target = $region13
    $region12: #{dense_rbs_density_3d.1} parent=1 // pred_region
      _
    $region13: #{dense_rbs_density_3d.1} parent=1 // pred_fallthru
      _
    // Predicated region
    $region14: #{dense_rbs_density_3d.1} parent=1 // pred_check
      _
    $region15: #{dense_rbs_density_3d.1} parent=1 // pred_check_branch
      %36 = sbr.rel (0) target = $region17
    $region16: #{dense_rbs_density_3d.1} parent=1 // pred_region
      _
    $region17: #{dense_rbs_density_3d.1} parent=1 // pred_fallthru
      _
    // Predicated region
    $region18: #{dense_rbs_density_3d.1} parent=1 // pred_check
      _
    $region19: #{dense_rbs_density_3d.1} parent=1 // pred_check_branch
      %38 = sbr.rel (0) target = $region21
    $region20: #{dense_rbs_density_3d.1} parent=1 // pred_region
      _
    $region21: #{dense_rbs_density_3d.1} parent=1 // pred_fallthru
      _
    // Predicated region
    $region22: #{dense_rbs_density_3d.1} parent=1 // pred_check
      _
    $region23: #{dense_rbs_density_3d.1} parent=1 // pred_check_branch
      %40 = sbr.rel (0) target = $region25
    $region24: #{dense_rbs_density_3d.1} parent=1 // pred_region
      _
    $region25: #{dense_rbs_density_3d.1} parent=1 // pred_fallthru
      _
    // Predicated region
    $region26: #{dense_rbs_density_3d.1} parent=1 // pred_check
      _
    $region27: #{dense_rbs_density_3d.1} parent=1 // pred_check_branch
      %42 = sbr.rel (0) target = $region29
    $region28: #{dense_rbs_density_3d.1} parent=1 // pred_region
      %43 = dma.done [#allocation3], 16
    $region29: #{dense_rbs_density_3d.1} parent=1 // pred_fallthru
      _
    // Predicated region
    $region30: #{dense_rbs_density_3d.1} parent=1 // pred_check
      _
    $region31: #{dense_rbs_density_3d.1} parent=1 // pred_check_branch
      %45 = sbr.rel (0) target = $region33
    $region32: #{dense_rbs_density_3d.1} parent=1 // pred_region
      %46 = dma.done [#allocation5], 16
    $region33: #{dense_rbs_density_3d.1} parent=1 // pred_fallthru
      _
    %47 = sfence
    %v48 = vld [vmem:[%s2] sm:$0xff]
    %v49 = vld [vmem:[%s2 + $0x8] sm:$0xff]
    %v50 = vld [vmem:[%s2 + $0x10] sm:$0xff]
    %v51 = vld [vmem:[%s2 + $0x18] sm:$0xf]
    %s52 = sld [smem:[#allocation2]]
    %v53 = vstv %s52
    %v54 = vmul.f32 %v48, %v53
    %v55 = vmul.f32 %v49, %v53
    %v56 = vmul.f32 %v50, %v53
    %v57 = vmul.f32 %v51, %v53
    %v58 = vld [vmem:[%s3] sm:$0xff]
    %v59 = vld [vmem:[%s3 + $0x8] sm:$0xff]
    %v60 = vld [vmem:[%s3 + $0x10] sm:$0xff]
    %v61 = vld [vmem:[%s3 + $0x18] sm:$0xf]
    %s62 = sld [smem:[#allocation4]]
    %v63 = vstv %s62
    %v64 = vmul.f32 %v58, %v63
    %v65 = vmul.f32 %v59, %v63
    %v66 = vmul.f32 %v60, %v63
    %v67 = vmul.f32 %v61, %v63
    %v68 = vadd.f32 %v54, %v64
    %v69 = vadd.f32 %v55, %v65
    %v70 = vadd.f32 %v56, %v66
    %v71 = vadd.f32 %v57, %v67
    %v72 = vld [vmem:[%s4] sm:$0xff]
    %v73 = vld [vmem:[%s4 + $0x8] sm:$0xff]
    %v74 = vld [vmem:[%s4 + $0x10] sm:$0xff]
    %v75 = vld [vmem:[%s4 + $0x18] sm:$0xf]
    %v76 = vadd.f32 %v68, %v72
    %v77 = vadd.f32 %v69, %v73
    %v78 = vadd.f32 %v70, %v74
    %v79 = vadd.f32 %v71, %v75
    %s80 = scalar_lea.vmem %s2, 32
    %v81 = vld [vmem:[%s80] sm:$0xff]
    %v82 = vld [vmem:[%s80 + $0x8] sm:$0xff]
    %v83 = vld [vmem:[%s80 + $0x10] sm:$0xff]
    %v84 = vld [vmem:[%s80 + $0x18] sm:$0xf]
    %s85 = sld [smem:[#allocation2 + $0x1]]
    %v86 = vstv %s85
    %v87 = vmul.f32 %v81, %v86
    %v88 = vmul.f32 %v82, %v86
    %v89 = vmul.f32 %v83, %v86
    %v90 = vmul.f32 %v84, %v86
    %s91 = scalar_lea.vmem %s3, 32
    %v92 = vld [vmem:[%s91] sm:$0xff]
    %v93 = vld [vmem:[%s91 + $0x8] sm:$0xff]
    %v94 = vld [vmem:[%s91 + $0x10] sm:$0xff]
    %v95 = vld [vmem:[%s91 + $0x18] sm:$0xf]
    %s96 = sld [smem:[#allocation4 + $0x1]]
    %v97 = vstv %s96
    %v98 = vmul.f32 %v92, %v97
    %v99 = vmul.f32 %v93, %v97
    %v100 = vmul.f32 %v94, %v97
    %v101 = vmul.f32 %v95, %v97
    %v102 = vadd.f32 %v87, %v98
    %v103 = vadd.f32 %v88, %v99
    %v104 = vadd.f32 %v89, %v100
    %v105 = vadd.f32 %v90, %v101
    %s106 = scalar_lea.vmem %s4, 32
    %v107 = vld [vmem:[%s106] sm:$0xff]
    %v108 = vld [vmem:[%s106 + $0x8] sm:$0xff]
    %v109 = vld [vmem:[%s106 + $0x10] sm:$0xff]
    %v110 = vld [vmem:[%s106 + $0x18] sm:$0xf]
    %v111 = vadd.f32 %v102, %v107
    %v112 = vadd.f32 %v103, %v108
    %v113 = vadd.f32 %v104, %v109
    %v114 = vadd.f32 %v105, %v110
    %vm115 = vcmask 228352
    %v117 = vsel %vm115, %v111, 0
    %v120 = vsel %vm115, %v112, 0
    %v123 = vsel %vm115, %v113, 0
    %v126 = vsel %vm115, %v114, 0
    %vm128 = vcmask 1043456
    %v130 = vsel %vm128, %v79, 0
    %132 = vmatprep.subr.mxu0 0.0
    %133 = vmatpush1.msra.mxu0 0.0
    %134 = vmatprep.subr.mxu0 0.0
    %135 = vmatpush1.msra.mxu0 0.0
    %136 = vmatprep.subr.mxu0 0.0
    %137 = vmatpush1.msra.mxu0 0.0
    %138 = vmatprep.subr.mxu0 0.0
    %139 = vmatpush1.msra.mxu0 0.0
    %140 = vmatprep.subr.mxu0 0.0
    %141 = vmatpush1.msra.mxu0 0.0
    %142 = vmatprep.subr.mxu0 0.0
    %143 = vmatpush1.msra.mxu0 0.0
    %144 = vmatprep.subr.mxu0 0.0
    %145 = vmatpush1.msra.mxu0 0.0
    %146 = vmatprep.subr.mxu0 0.0
    %147 = vmatpush1.msra.mxu0 0.0
    %148 = vmatprep.subr.mxu0 0.0
    %149 = vmatpush1.msra.mxu0 0.0
    %150 = vmatprep.subr.mxu0 0.0
    %151 = vmatpush1.msra.mxu0 0.0
    %152 = vmatprep.subr.mxu0 0.0
    %153 = vmatpush1.msra.mxu0 0.0
    %154 = vmatprep.subr.mxu0 0.0
    %155 = vmatpush1.msra.mxu0 0.0
    %156 = vmatprep.subr.mxu0 0.0
    %157 = vmatpush1.msra.mxu0 %v130
    %158 = vmatprep.subr.mxu0 0.0
    %159 = vmatpush1.msra.mxu0 %v78
    %160 = vmatprep.subr.mxu0 0.0
    %161 = vmatpush1.msra.mxu0 %v77
    %162 = vmatprep.subr.mxu0 0.0
    %163 = vmatpush1.msra.mxu0 %v76
    %164 = vmatprep.subr.mxu0 0.0
    %165 = vmatpush2.msra.mxu0 0.0
    %166 = vmatprep.subr.mxu0 0.0
    %167 = vmatpush2.msra.mxu0 0.0
    %168 = vmatprep.subr.mxu0 0.0
    %169 = vmatpush2.msra.mxu0 0.0
    %170 = vmatprep.subr.mxu0 0.0
    %171 = vmatpush2.msra.mxu0 0.0
    %172 = vmatprep.subr.mxu0 0.0
    %173 = vmatpush2.msra.mxu0 0.0
    %174 = vmatprep.subr.mxu0 0.0
    %175 = vmatpush2.msra.mxu0 0.0
    %176 = vmatprep.subr.mxu0 0.0
    %177 = vmatpush2.msra.mxu0 0.0
    %178 = vmatprep.subr.mxu0 0.0
    %179 = vmatpush2.msra.mxu0 0.0
    %180 = vmatprep.subr.mxu0 0.0
    %181 = vmatpush2.msra.mxu0 0.0
    %182 = vmatprep.subr.mxu0 0.0
    %183 = vmatpush2.msra.mxu0 0.0
    %184 = vmatprep.subr.mxu0 0.0
    %185 = vmatpush2.msra.mxu0 0.0
    %186 = vmatprep.subr.mxu0 0.0
    %187 = vmatpush2.msra.mxu0 0.0
    %188 = vmatprep.subr.mxu0 0.0
    %189 = vmatpush2.msra.mxu0 0.0
    %190 = vmatprep.subr.mxu0 0.0
    %191 = vmatpush2.msra.mxu0 0.0
    %192 = vmatprep.subr.mxu0 0.0
    %193 = vmatpush2.msra.mxu0 0.0
    %194 = vmatprep.subr.mxu0 0.0
    %195 = vmatpush2.msra.mxu0 0.0
    %196 = vmatprep.mubr.f32.mxu0 0.0
    %197 = vmatmul.mubr.f32.gmra.mxu0 %v117
    %v198 = vpop.f32.mrf.mxu0
    %v199 = vadd.f32 0.0, %v198
    %v200 = vpop.f32.mrf.mxu0
    %201 = vmatprep.mubr.f32.mxu0 0.0
    %202 = vmatmul.mubr.f32.gmra.mxu0 %v120
    %v203 = vpop.f32.mrf.mxu0
    %v204 = vadd.f32 0.0, %v203
    %v205 = vpop.f32.mrf.mxu0
    %206 = vmatprep.mubr.f32.mxu0 0.0
    %207 = vmatmul.mubr.f32.gmra.mxu0 %v123
    %v208 = vpop.f32.mrf.mxu0
    %v209 = vadd.f32 0.0, %v208
    %v210 = vpop.f32.mrf.mxu0
    %211 = vmatprep.mubr.f32.mxu0 0.0
    %212 = vmatmul.mubr.f32.gmra.mxu0 %v126
    %v213 = vpop.f32.mrf.mxu0
    %v214 = vadd.f32 0.0, %v213
    %v215 = vpop.f32.mrf.mxu0
    %216 = vdwg.mxu0
    %s217 = scalar_lea.vmem %s2, 64
    %v218 = vld [vmem:[%s217] sm:$0xff]
    %v219 = vld [vmem:[%s217 + $0x8] sm:$0xff]
    %v220 = vld [vmem:[%s217 + $0x10] sm:$0xff]
    %v221 = vld [vmem:[%s217 + $0x18] sm:$0xf]
    %s222 = sld [smem:[#allocation2 + $0x2]]
    %v223 = vstv %s222
    %v224 = vmul.f32 %v218, %v223
    %v225 = vmul.f32 %v219, %v223
    %v226 = vmul.f32 %v220, %v223
    %v227 = vmul.f32 %v221, %v223
    %s228 = scalar_lea.vmem %s3, 64
    %v229 = vld [vmem:[%s228] sm:$0xff]
    %v230 = vld [vmem:[%s228 + $0x8] sm:$0xff]
    %v231 = vld [vmem:[%s228 + $0x10] sm:$0xff]
    %v232 = vld [vmem:[%s228 + $0x18] sm:$0xf]
    %s233 = sld [smem:[#allocation4 + $0x2]]
    %v234 = vstv %s233
    %v235 = vmul.f32 %v229, %v234
    %v236 = vmul.f32 %v230, %v234
    %v237 = vmul.f32 %v231, %v234
    %v238 = vmul.f32 %v232, %v234
    %v239 = vadd.f32 %v224, %v235
    %v240 = vadd.f32 %v225, %v236
    %v241 = vadd.f32 %v226, %v237
    %v242 = vadd.f32 %v227, %v238
    %s243 = scalar_lea.vmem %s4, 64
    %v244 = vld [vmem:[%s243] sm:$0xff]
    %v245 = vld [vmem:[%s243 + $0x8] sm:$0xff]
    %v246 = vld [vmem:[%s243 + $0x10] sm:$0xff]
    %v247 = vld [vmem:[%s243 + $0x18] sm:$0xf]
    %v248 = vadd.f32 %v239, %v244
    %v249 = vadd.f32 %v240, %v245
    %v250 = vadd.f32 %v241, %v246
    %v251 = vadd.f32 %v242, %v247
    %v253 = vsel %vm115, %v248, 0
    %v256 = vsel %vm115, %v249, 0
    %v259 = vsel %vm115, %v250, 0
    %v262 = vsel %vm115, %v251, 0
    %v265 = vsel %vm128, %v214, 0
    %267 = vmatprep.subr.mxu0 0.0
    %268 = vmatpush1.msra.mxu0 0.0
    %269 = vmatprep.subr.mxu0 0.0
    %270 = vmatpush1.msra.mxu0 0.0
    %271 = vmatprep.subr.mxu0 0.0
    %272 = vmatpush1.msra.mxu0 0.0
    %273 = vmatprep.subr.mxu0 0.0
    %274 = vmatpush1.msra.mxu0 0.0
    %275 = vmatprep.subr.mxu0 0.0
    %276 = vmatpush1.msra.mxu0 0.0
    %277 = vmatprep.subr.mxu0 0.0
    %278 = vmatpush1.msra.mxu0 0.0
    %279 = vmatprep.subr.mxu0 0.0
    %280 = vmatpush1.msra.mxu0 0.0
    %281 = vmatprep.subr.mxu0 0.0
    %282 = vmatpush1.msra.mxu0 0.0
    %283 = vmatprep.subr.mxu0 0.0
    %284 = vmatpush1.msra.mxu0 0.0
    %285 = vmatprep.subr.mxu0 0.0
    %286 = vmatpush1.msra.mxu0 0.0
    %287 = vmatprep.subr.mxu0 0.0
    %288 = vmatpush1.msra.mxu0 0.0
    %289 = vmatprep.subr.mxu0 0.0
    %290 = vmatpush1.msra.mxu0 0.0
    %291 = vmatprep.subr.mxu0 0.0
    %292 = vmatpush1.msra.mxu0 %v265
    %293 = vmatprep.subr.mxu0 0.0
    %294 = vmatpush1.msra.mxu0 %v209
    %295 = vmatprep.subr.mxu0 0.0
    %296 = vmatpush1.msra.mxu0 %v204
    %297 = vmatprep.subr.mxu0 0.0
    %298 = vmatpush1.msra.mxu0 %v199
    %299 = vmatprep.subr.mxu0 0.0
    %300 = vmatpush2.msra.mxu0 0.0
    %301 = vmatprep.subr.mxu0 0.0
    %302 = vmatpush2.msra.mxu0 0.0
    %303 = vmatprep.subr.mxu0 0.0
    %304 = vmatpush2.msra.mxu0 0.0
    %305 = vmatprep.subr.mxu0 0.0
    %306 = vmatpush2.msra.mxu0 0.0
    %307 = vmatprep.subr.mxu0 0.0
    %308 = vmatpush2.msra.mxu0 0.0
    %309 = vmatprep.subr.mxu0 0.0
    %310 = vmatpush2.msra.mxu0 0.0
    %311 = vmatprep.subr.mxu0 0.0
    %312 = vmatpush2.msra.mxu0 0.0
    %313 = vmatprep.subr.mxu0 0.0
    %314 = vmatpush2.msra.mxu0 0.0
    %315 = vmatprep.subr.mxu0 0.0
    %316 = vmatpush2.msra.mxu0 0.0
    %317 = vmatprep.subr.mxu0 0.0
    %318 = vmatpush2.msra.mxu0 0.0
    %319 = vmatprep.subr.mxu0 0.0
    %320 = vmatpush2.msra.mxu0 0.0
    %321 = vmatprep.subr.mxu0 0.0
    %322 = vmatpush2.msra.mxu0 0.0
    %323 = vmatprep.subr.mxu0 0.0
    %324 = vmatpush2.msra.mxu0 0.0
    %325 = vmatprep.subr.mxu0 0.0
    %326 = vmatpush2.msra.mxu0 0.0
    %327 = vmatprep.subr.mxu0 0.0
    %328 = vmatpush2.msra.mxu0 0.0
    %329 = vmatprep.subr.mxu0 0.0
    %330 = vmatpush2.msra.mxu0 0.0
    %331 = vmatprep.mubr.f32.mxu0 0.0
    %332 = vmatmul.mubr.f32.gmra.mxu0 %v253
    %v333 = vpop.f32.mrf.mxu0
    %v334 = vadd.f32 0.0, %v333
    %v335 = vpop.f32.mrf.mxu0
    %336 = vmatprep.mubr.f32.mxu0 0.0
    %337 = vmatmul.mubr.f32.gmra.mxu0 %v256
    %v338 = vpop.f32.mrf.mxu0
    %v339 = vadd.f32 0.0, %v338
    %v340 = vpop.f32.mrf.mxu0
    %341 = vmatprep.mubr.f32.mxu0 0.0
    %342 = vmatmul.mubr.f32.gmra.mxu0 %v259
    %v343 = vpop.f32.mrf.mxu0
    %v344 = vadd.f32 0.0, %v343
    %v345 = vpop.f32.mrf.mxu0
    %346 = vmatprep.mubr.f32.mxu0 0.0
    %347 = vmatmul.mubr.f32.gmra.mxu0 %v262
    %v348 = vpop.f32.mrf.mxu0
    %v349 = vadd.f32 0.0, %v348
    %v350 = vpop.f32.mrf.mxu0
    %351 = vdwg.mxu0
    %s352 = scalar_lea.vmem %s2, 96
    %v353 = vld [vmem:[%s352] sm:$0xff]
    %v354 = vld [vmem:[%s352 + $0x8] sm:$0xff]
    %v355 = vld [vmem:[%s352 + $0x10] sm:$0xff]
    %v356 = vld [vmem:[%s352 + $0x18] sm:$0xf]
    %s357 = sld [smem:[#allocation2 + $0x3]]
    %v358 = vstv %s357
    %v359 = vmul.f32 %v353, %v358
    %v360 = vmul.f32 %v354, %v358
    %v361 = vmul.f32 %v355, %v358
    %v362 = vmul.f32 %v356, %v358
    %s363 = scalar_lea.vmem %s3, 96
    %v364 = vld [vmem:[%s363] sm:$0xff]
    %v365 = vld [vmem:[%s363 + $0x8] sm:$0xff]
    %v366 = vld [vmem:[%s363 + $0x10] sm:$0xff]
    %v367 = vld [vmem:[%s363 + $0x18] sm:$0xf]
    %s368 = sld [smem:[#allocation4 + $0x3]]
    %v369 = vstv %s368
    %v370 = vmul.f32 %v364, %v369
    %v371 = vmul.f32 %v365, %v369
    %v372 = vmul.f32 %v366, %v369
    %v373 = vmul.f32 %v367, %v369
    %v374 = vadd.f32 %v359, %v370
    %v375 = vadd.f32 %v360, %v371
    %v376 = vadd.f32 %v361, %v372
    %v377 = vadd.f32 %v362, %v373
    %s378 = scalar_lea.vmem %s4, 96
    %v379 = vld [vmem:[%s378] sm:$0xff]
    %v380 = vld [vmem:[%s378 + $0x8] sm:$0xff]
    %v381 = vld [vmem:[%s378 + $0x10] sm:$0xff]
    %v382 = vld [vmem:[%s378 + $0x18] sm:$0xf]
    %v383 = vadd.f32 %v374, %v379
    %v384 = vadd.f32 %v375, %v380
    %v385 = vadd.f32 %v376, %v381
    %v386 = vadd.f32 %v377, %v382
    %v388 = vsel %vm115, %v383, 0
    %v391 = vsel %vm115, %v384, 0
    %v394 = vsel %vm115, %v385, 0
    %v397 = vsel %vm115, %v386, 0
    %v400 = vsel %vm128, %v349, 0
    %402 = vmatprep.subr.mxu0 0.0
    %403 = vmatpush1.msra.mxu0 0.0
    %404 = vmatprep.subr.mxu0 0.0
    %405 = vmatpush1.msra.mxu0 0.0
    %406 = vmatprep.subr.mxu0 0.0
    %407 = vmatpush1.msra.mxu0 0.0
    %408 = vmatprep.subr.mxu0 0.0
    %409 = vmatpush1.msra.mxu0 0.0
    %410 = vmatprep.subr.mxu0 0.0
    %411 = vmatpush1.msra.mxu0 0.0
    %412 = vmatprep.subr.mxu0 0.0
    %413 = vmatpush1.msra.mxu0 0.0
    %414 = vmatprep.subr.mxu0 0.0
    %415 = vmatpush1.msra.mxu0 0.0
    %416 = vmatprep.subr.mxu0 0.0
    %417 = vmatpush1.msra.mxu0 0.0
    %418 = vmatprep.subr.mxu0 0.0
    %419 = vmatpush1.msra.mxu0 0.0
    %420 = vmatprep.subr.mxu0 0.0
    %421 = vmatpush1.msra.mxu0 0.0
    %422 = vmatprep.subr.mxu0 0.0
    %423 = vmatpush1.msra.mxu0 0.0
    %424 = vmatprep.subr.mxu0 0.0
    %425 = vmatpush1.msra.mxu0 0.0
    %426 = vmatprep.subr.mxu0 0.0
    %427 = vmatpush1.msra.mxu0 %v400
    %428 = vmatprep.subr.mxu0 0.0
    %429 = vmatpush1.msra.mxu0 %v344
    %430 = vmatprep.subr.mxu0 0.0
    %431 = vmatpush1.msra.mxu0 %v339
    %432 = vmatprep.subr.mxu0 0.0
    %433 = vmatpush1.msra.mxu0 %v334
    %434 = vmatprep.subr.mxu0 0.0
    %435 = vmatpush2.msra.mxu0 0.0
    %436 = vmatprep.subr.mxu0 0.0
    %437 = vmatpush2.msra.mxu0 0.0
    %438 = vmatprep.subr.mxu0 0.0
    %439 = vmatpush2.msra.mxu0 0.0
    %440 = vmatprep.subr.mxu0 0.0
    %441 = vmatpush2.msra.mxu0 0.0
    %442 = vmatprep.subr.mxu0 0.0
    %443 = vmatpush2.msra.mxu0 0.0
    %444 = vmatprep.subr.mxu0 0.0
    %445 = vmatpush2.msra.mxu0 0.0
    %446 = vmatprep.subr.mxu0 0.0
    %447 = vmatpush2.msra.mxu0 0.0
    %448 = vmatprep.subr.mxu0 0.0
    %449 = vmatpush2.msra.mxu0 0.0
    %450 = vmatprep.subr.mxu0 0.0
    %451 = vmatpush2.msra.mxu0 0.0
    %452 = vmatprep.subr.mxu0 0.0
    %453 = vmatpush2.msra.mxu0 0.0
    %454 = vmatprep.subr.mxu0 0.0
    %455 = vmatpush2.msra.mxu0 0.0
    %456 = vmatprep.subr.mxu0 0.0
    %457 = vmatpush2.msra.mxu0 0.0
    %458 = vmatprep.subr.mxu0 0.0
    %459 = vmatpush2.msra.mxu0 0.0
    %460 = vmatprep.subr.mxu0 0.0
    %461 = vmatpush2.msra.mxu0 0.0
    %462 = vmatprep.subr.mxu0 0.0
    %463 = vmatpush2.msra.mxu0 0.0
    %464 = vmatprep.subr.mxu0 0.0
    %465 = vmatpush2.msra.mxu0 0.0
    %466 = vmatprep.mubr.f32.mxu0 0.0
    %467 = vmatmul.mubr.f32.gmra.mxu0 %v388
    %v468 = vpop.f32.mrf.mxu0
    %v469 = vadd.f32 0.0, %v468
    %v470 = vpop.f32.mrf.mxu0
    %471 = vmatprep.mubr.f32.mxu0 0.0
    %472 = vmatmul.mubr.f32.gmra.mxu0 %v391
    %v473 = vpop.f32.mrf.mxu0
    %v474 = vadd.f32 0.0, %v473
    %v475 = vpop.f32.mrf.mxu0
    %476 = vmatprep.mubr.f32.mxu0 0.0
    %477 = vmatmul.mubr.f32.gmra.mxu0 %v394
    %v478 = vpop.f32.mrf.mxu0
    %v479 = vadd.f32 0.0, %v478
    %v480 = vpop.f32.mrf.mxu0
    %481 = vmatprep.mubr.f32.mxu0 0.0
    %482 = vmatmul.mubr.f32.gmra.mxu0 %v397
    %v483 = vpop.f32.mrf.mxu0
    %v484 = vadd.f32 0.0, %v483
    %v485 = vpop.f32.mrf.mxu0
    %486 = vdwg.mxu0
    %s487 = scalar_lea.vmem %s2, 128
    %v488 = vld [vmem:[%s487] sm:$0xff]
    %v489 = vld [vmem:[%s487 + $0x8] sm:$0xff]
    %v490 = vld [vmem:[%s487 + $0x10] sm:$0xff]
    %v491 = vld [vmem:[%s487 + $0x18] sm:$0xf]
    %s492 = sld [smem:[#allocation2 + $0x4]]
    %v493 = vstv %s492
    %v494 = vmul.f32 %v488, %v493
    %v495 = vmul.f32 %v489, %v493
    %v496 = vmul.f32 %v490, %v493
    %v497 = vmul.f32 %v491, %v493
    %s498 = scalar_lea.vmem %s3, 128
    %v499 = vld [vmem:[%s498] sm:$0xff]
    %v500 = vld [vmem:[%s498 + $0x8] sm:$0xff]
    %v501 = vld [vmem:[%s498 + $0x10] sm:$0xff]
    %v502 = vld [vmem:[%s498 + $0x18] sm:$0xf]
    %s503 = sld [smem:[#allocation4 + $0x4]]
    %v504 = vstv %s503
    %v505 = vmul.f32 %v499, %v504
    %v506 = vmul.f32 %v500, %v504
    %v507 = vmul.f32 %v501, %v504
    %v508 = vmul.f32 %v502, %v504
    %v509 = vadd.f32 %v494, %v505
    %v510 = vadd.f32 %v495, %v506
    %v511 = vadd.f32 %v496, %v507
    %v512 = vadd.f32 %v497, %v508
    %s513 = scalar_lea.vmem %s4, 128
    %v514 = vld [vmem:[%s513] sm:$0xff]
    %v515 = vld [vmem:[%s513 + $0x8] sm:$0xff]
    %v516 = vld [vmem:[%s513 + $0x10] sm:$0xff]
    %v517 = vld [vmem:[%s513 + $0x18] sm:$0xf]
    %v518 = vadd.f32 %v509, %v514
    %v519 = vadd.f32 %v510, %v515
    %v520 = vadd.f32 %v511, %v516
    %v521 = vadd.f32 %v512, %v517
    %v523 = vsel %vm115, %v518, 0
    %v526 = vsel %vm115, %v519, 0
    %v529 = vsel %vm115, %v520, 0
    %v532 = vsel %vm115, %v521, 0
    %v535 = vsel %vm128, %v484, 0
    %537 = vmatprep.subr.mxu0 0.0
    %538 = vmatpush1.msra.mxu0 0.0
    %539 = vmatprep.subr.mxu0 0.0
    %540 = vmatpush1.msra.mxu0 0.0
    %541 = vmatprep.subr.mxu0 0.0
    %542 = vmatpush1.msra.mxu0 0.0
    %543 = vmatprep.subr.mxu0 0.0
    %544 = vmatpush1.msra.mxu0 0.0
    %545 = vmatprep.subr.mxu0 0.0
    %546 = vmatpush1.msra.mxu0 0.0
    %547 = vmatprep.subr.mxu0 0.0
    %548 = vmatpush1.msra.mxu0 0.0
    %549 = vmatprep.subr.mxu0 0.0
    %550 = vmatpush1.msra.mxu0 0.0
    %551 = vmatprep.subr.mxu0 0.0
    %552 = vmatpush1.msra.mxu0 0.0
    %553 = vmatprep.subr.mxu0 0.0
    %554 = vmatpush1.msra.mxu0 0.0
    %555 = vmatprep.subr.mxu0 0.0
    %556 = vmatpush1.msra.mxu0 0.0
    %557 = vmatprep.subr.mxu0 0.0
    %558 = vmatpush1.msra.mxu0 0.0
    %559 = vmatprep.subr.mxu0 0.0
    %560 = vmatpush1.msra.mxu0 0.0
    %561 = vmatprep.subr.mxu0 0.0
    %562 = vmatpush1.msra.mxu0 %v535
    %563 = vmatprep.subr.mxu0 0.0
    %564 = vmatpush1.msra.mxu0 %v479
    %565 = vmatprep.subr.mxu0 0.0
    %566 = vmatpush1.msra.mxu0 %v474
    %567 = vmatprep.subr.mxu0 0.0
    %568 = vmatpush1.msra.mxu0 %v469
    %569 = vmatprep.subr.mxu0 0.0
    %570 = vmatpush2.msra.mxu0 0.0
    %571 = vmatprep.subr.mxu0 0.0
    %572 = vmatpush2.msra.mxu0 0.0
    %573 = vmatprep.subr.mxu0 0.0
    %574 = vmatpush2.msra.mxu0 0.0
    %575 = vmatprep.subr.mxu0 0.0
    %576 = vmatpush2.msra.mxu0 0.0
    %577 = vmatprep.subr.mxu0 0.0
    %578 = vmatpush2.msra.mxu0 0.0
    %579 = vmatprep.subr.mxu0 0.0
    %580 = vmatpush2.msra.mxu0 0.0
    %581 = vmatprep.subr.mxu0 0.0
    %582 = vmatpush2.msra.mxu0 0.0
    %583 = vmatprep.subr.mxu0 0.0
    %584 = vmatpush2.msra.mxu0 0.0
    %585 = vmatprep.subr.mxu0 0.0
    %586 = vmatpush2.msra.mxu0 0.0
    %587 = vmatprep.subr.mxu0 0.0
    %588 = vmatpush2.msra.mxu0 0.0
    %589 = vmatprep.subr.mxu0 0.0
    %590 = vmatpush2.msra.mxu0 0.0
    %591 = vmatprep.subr.mxu0 0.0
    %592 = vmatpush2.msra.mxu0 0.0
    %593 = vmatprep.subr.mxu0 0.0
    %594 = vmatpush2.msra.mxu0 0.0
    %595 = vmatprep.subr.mxu0 0.0
    %596 = vmatpush2.msra.mxu0 0.0
    %597 = vmatprep.subr.mxu0 0.0
    %598 = vmatpush2.msra.mxu0 0.0
    %599 = vmatprep.subr.mxu0 0.0
    %600 = vmatpush2.msra.mxu0 0.0
    %601 = vmatprep.mubr.f32.mxu0 0.0
    %602 = vmatmul.mubr.f32.gmra.mxu0 %v523
    %v603 = vpop.f32.mrf.mxu0
    %v604 = vadd.f32 0.0, %v603
    %v605 = vpop.f32.mrf.mxu0
    %606 = vmatprep.mubr.f32.mxu0 0.0
    %607 = vmatmul.mubr.f32.gmra.mxu0 %v526
    %v608 = vpop.f32.mrf.mxu0
    %v609 = vadd.f32 0.0, %v608
    %v610 = vpop.f32.mrf.mxu0
    %611 = vmatprep.mubr.f32.mxu0 0.0
    %612 = vmatmul.mubr.f32.gmra.mxu0 %v529
    %v613 = vpop.f32.mrf.mxu0
    %v614 = vadd.f32 0.0, %v613
    %v615 = vpop.f32.mrf.mxu0
    %616 = vmatprep.mubr.f32.mxu0 0.0
    %617 = vmatmul.mubr.f32.gmra.mxu0 %v532
    %v618 = vpop.f32.mrf.mxu0
    %v619 = vadd.f32 0.0, %v618
    %v620 = vpop.f32.mrf.mxu0
    %621 = vdwg.mxu0
    %s622 = scalar_lea.vmem %s2, 160
    %v623 = vld [vmem:[%s622] sm:$0xff]
    %v624 = vld [vmem:[%s622 + $0x8] sm:$0xff]
    %v625 = vld [vmem:[%s622 + $0x10] sm:$0xff]
    %v626 = vld [vmem:[%s622 + $0x18] sm:$0xf]
    %s627 = sld [smem:[#allocation2 + $0x5]]
    %v628 = vstv %s627
    %v629 = vmul.f32 %v623, %v628
    %v630 = vmul.f32 %v624, %v628
    %v631 = vmul.f32 %v625, %v628
    %v632 = vmul.f32 %v626, %v628
    %s633 = scalar_lea.vmem %s3, 160
    %v634 = vld [vmem:[%s633] sm:$0xff]
    %v635 = vld [vmem:[%s633 + $0x8] sm:$0xff]
    %v636 = vld [vmem:[%s633 + $0x10] sm:$0xff]
    %v637 = vld [vmem:[%s633 + $0x18] sm:$0xf]
    %s638 = sld [smem:[#allocation4 + $0x5]]
    %v639 = vstv %s638
    %v640 = vmul.f32 %v634, %v639
    %v641 = vmul.f32 %v635, %v639
    %v642 = vmul.f32 %v636, %v639
    %v643 = vmul.f32 %v637, %v639
    %v644 = vadd.f32 %v629, %v640
    %v645 = vadd.f32 %v630, %v641
    %v646 = vadd.f32 %v631, %v642
    %v647 = vadd.f32 %v632, %v643
    %s648 = scalar_lea.vmem %s4, 160
    %v649 = vld [vmem:[%s648] sm:$0xff]
    %v650 = vld [vmem:[%s648 + $0x8] sm:$0xff]
    %v651 = vld [vmem:[%s648 + $0x10] sm:$0xff]
    %v652 = vld [vmem:[%s648 + $0x18] sm:$0xf]
    %v653 = vadd.f32 %v644, %v649
    %v654 = vadd.f32 %v645, %v650
    %v655 = vadd.f32 %v646, %v651
    %v656 = vadd.f32 %v647, %v652
    %v658 = vsel %vm115, %v653, 0
    %v661 = vsel %vm115, %v654, 0
    %v664 = vsel %vm115, %v655, 0
    %v667 = vsel %vm115, %v656, 0
    %v670 = vsel %vm128, %v619, 0
    %672 = vmatprep.subr.mxu0 0.0
    %673 = vmatpush1.msra.mxu0 0.0
    %674 = vmatprep.subr.mxu0 0.0
    %675 = vmatpush1.msra.mxu0 0.0
    %676 = vmatprep.subr.mxu0 0.0
    %677 = vmatpush1.msra.mxu0 0.0
    %678 = vmatprep.subr.mxu0 0.0
    %679 = vmatpush1.msra.mxu0 0.0
    %680 = vmatprep.subr.mxu0 0.0
    %681 = vmatpush1.msra.mxu0 0.0
    %682 = vmatprep.subr.mxu0 0.0
    %683 = vmatpush1.msra.mxu0 0.0
    %684 = vmatprep.subr.mxu0 0.0
    %685 = vmatpush1.msra.mxu0 0.0
    %686 = vmatprep.subr.mxu0 0.0
    %687 = vmatpush1.msra.mxu0 0.0
    %688 = vmatprep.subr.mxu0 0.0
    %689 = vmatpush1.msra.mxu0 0.0
    %690 = vmatprep.subr.mxu0 0.0
    %691 = vmatpush1.msra.mxu0 0.0
    %692 = vmatprep.subr.mxu0 0.0
    %693 = vmatpush1.msra.mxu0 0.0
    %694 = vmatprep.subr.mxu0 0.0
    %695 = vmatpush1.msra.mxu0 0.0
    %696 = vmatprep.subr.mxu0 0.0
    %697 = vmatpush1.msra.mxu0 %v670
    %698 = vmatprep.subr.mxu0 0.0
    %699 = vmatpush1.msra.mxu0 %v614
    %700 = vmatprep.subr.mxu0 0.0
    %701 = vmatpush1.msra.mxu0 %v609
    %702 = vmatprep.subr.mxu0 0.0
    %703 = vmatpush1.msra.mxu0 %v604
    %704 = vmatprep.subr.mxu0 0.0
    %705 = vmatpush2.msra.mxu0 0.0
    %706 = vmatprep.subr.mxu0 0.0
    %707 = vmatpush2.msra.mxu0 0.0
    %708 = vmatprep.subr.mxu0 0.0
    %709 = vmatpush2.msra.mxu0 0.0
    %710 = vmatprep.subr.mxu0 0.0
    %711 = vmatpush2.msra.mxu0 0.0
    %712 = vmatprep.subr.mxu0 0.0
    %713 = vmatpush2.msra.mxu0 0.0
    %714 = vmatprep.subr.mxu0 0.0
    %715 = vmatpush2.msra.mxu0 0.0
    %716 = vmatprep.subr.mxu0 0.0
    %717 = vmatpush2.msra.mxu0 0.0
    %718 = vmatprep.subr.mxu0 0.0
    %719 = vmatpush2.msra.mxu0 0.0
    %720 = vmatprep.subr.mxu0 0.0
    %721 = vmatpush2.msra.mxu0 0.0
    %722 = vmatprep.subr.mxu0 0.0
    %723 = vmatpush2.msra.mxu0 0.0
    %724 = vmatprep.subr.mxu0 0.0
    %725 = vmatpush2.msra.mxu0 0.0
    %726 = vmatprep.subr.mxu0 0.0
    %727 = vmatpush2.msra.mxu0 0.0
    %728 = vmatprep.subr.mxu0 0.0
    %729 = vmatpush2.msra.mxu0 0.0
    %730 = vmatprep.subr.mxu0 0.0
    %731 = vmatpush2.msra.mxu0 0.0
    %732 = vmatprep.subr.mxu0 0.0
    %733 = vmatpush2.msra.mxu0 0.0
    %734 = vmatprep.subr.mxu0 0.0
    %735 = vmatpush2.msra.mxu0 0.0
    %736 = vmatprep.mubr.f32.mxu0 0.0
    %737 = vmatmul.mubr.f32.gmra.mxu0 %v658
    %v738 = vpop.f32.mrf.mxu0
    %v739 = vadd.f32 0.0, %v738
    %v740 = vpop.f32.mrf.mxu0
    %741 = vmatprep.mubr.f32.mxu0 0.0
    %742 = vmatmul.mubr.f32.gmra.mxu0 %v661
    %v743 = vpop.f32.mrf.mxu0
    %v744 = vadd.f32 0.0, %v743
    %v745 = vpop.f32.mrf.mxu0
    %746 = vmatprep.mubr.f32.mxu0 0.0
    %747 = vmatmul.mubr.f32.gmra.mxu0 %v664
    %v748 = vpop.f32.mrf.mxu0
    %v749 = vadd.f32 0.0, %v748
    %v750 = vpop.f32.mrf.mxu0
    %751 = vmatprep.mubr.f32.mxu0 0.0
    %752 = vmatmul.mubr.f32.gmra.mxu0 %v667
    %v753 = vpop.f32.mrf.mxu0
    %v754 = vadd.f32 0.0, %v753
    %v755 = vpop.f32.mrf.mxu0
    %756 = vdwg.mxu0
    %s757 = scalar_lea.vmem %s2, 192
    %v758 = vld [vmem:[%s757] sm:$0xff]
    %v759 = vld [vmem:[%s757 + $0x8] sm:$0xff]
    %v760 = vld [vmem:[%s757 + $0x10] sm:$0xff]
    %v761 = vld [vmem:[%s757 + $0x18] sm:$0xf]
    %s762 = sld [smem:[#allocation2 + $0x6]]
    %v763 = vstv %s762
    %v764 = vmul.f32 %v758, %v763
    %v765 = vmul.f32 %v759, %v763
    %v766 = vmul.f32 %v760, %v763
    %v767 = vmul.f32 %v761, %v763
    %s768 = scalar_lea.vmem %s3, 192
    %v769 = vld [vmem:[%s768] sm:$0xff]
    %v770 = vld [vmem:[%s768 + $0x8] sm:$0xff]
    %v771 = vld [vmem:[%s768 + $0x10] sm:$0xff]
    %v772 = vld [vmem:[%s768 + $0x18] sm:$0xf]
    %s773 = sld [smem:[#allocation4 + $0x6]]
    %v774 = vstv %s773
    %v775 = vmul.f32 %v769, %v774
    %v776 = vmul.f32 %v770, %v774
    %v777 = vmul.f32 %v771, %v774
    %v778 = vmul.f32 %v772, %v774
    %v779 = vadd.f32 %v764, %v775
    %v780 = vadd.f32 %v765, %v776
    %v781 = vadd.f32 %v766, %v777
    %v782 = vadd.f32 %v767, %v778
    %s783 = scalar_lea.vmem %s4, 192
    %v784 = vld [vmem:[%s783] sm:$0xff]
    %v785 = vld [vmem:[%s783 + $0x8] sm:$0xff]
    %v786 = vld [vmem:[%s783 + $0x10] sm:$0xff]
    %v787 = vld [vmem:[%s783 + $0x18] sm:$0xf]
    %v788 = vadd.f32 %v779, %v784
    %v789 = vadd.f32 %v780, %v785
    %v790 = vadd.f32 %v781, %v786
    %v791 = vadd.f32 %v782, %v787
    %v793 = vsel %vm115, %v788, 0
    %v796 = vsel %vm115, %v789, 0
    %v799 = vsel %vm115, %v790, 0
    %v802 = vsel %vm115, %v791, 0
    %v805 = vsel %vm128, %v754, 0
    %807 = vmatprep.subr.mxu0 0.0
    %808 = vmatpush1.msra.mxu0 0.0
    %809 = vmatprep.subr.mxu0 0.0
    %810 = vmatpush1.msra.mxu0 0.0
    %811 = vmatprep.subr.mxu0 0.0
    %812 = vmatpush1.msra.mxu0 0.0
    %813 = vmatprep.subr.mxu0 0.0
    %814 = vmatpush1.msra.mxu0 0.0
    %815 = vmatprep.subr.mxu0 0.0
    %816 = vmatpush1.msra.mxu0 0.0
    %817 = vmatprep.subr.mxu0 0.0
    %818 = vmatpush1.msra.mxu0 0.0
    %819 = vmatprep.subr.mxu0 0.0
    %820 = vmatpush1.msra.mxu0 0.0
    %821 = vmatprep.subr.mxu0 0.0
    %822 = vmatpush1.msra.mxu0 0.0
    %823 = vmatprep.subr.mxu0 0.0
    %824 = vmatpush1.msra.mxu0 0.0
    %825 = vmatprep.subr.mxu0 0.0
    %826 = vmatpush1.msra.mxu0 0.0
    %827 = vmatprep.subr.mxu0 0.0
    %828 = vmatpush1.msra.mxu0 0.0
    %829 = vmatprep.subr.mxu0 0.0
    %830 = vmatpush1.msra.mxu0 0.0
    %831 = vmatprep.subr.mxu0 0.0
    %832 = vmatpush1.msra.mxu0 %v805
    %833 = vmatprep.subr.mxu0 0.0
    %834 = vmatpush1.msra.mxu0 %v749
    %835 = vmatprep.subr.mxu0 0.0
    %836 = vmatpush1.msra.mxu0 %v744
    %837 = vmatprep.subr.mxu0 0.0
    %838 = vmatpush1.msra.mxu0 %v739
    %839 = vmatprep.subr.mxu0 0.0
    %840 = vmatpush2.msra.mxu0 0.0
    %841 = vmatprep.subr.mxu0 0.0
    %842 = vmatpush2.msra.mxu0 0.0
    %843 = vmatprep.subr.mxu0 0.0
    %844 = vmatpush2.msra.mxu0 0.0
    %845 = vmatprep.subr.mxu0 0.0
    %846 = vmatpush2.msra.mxu0 0.0
    %847 = vmatprep.subr.mxu0 0.0
    %848 = vmatpush2.msra.mxu0 0.0
    %849 = vmatprep.subr.mxu0 0.0
    %850 = vmatpush2.msra.mxu0 0.0
    %851 = vmatprep.subr.mxu0 0.0
    %852 = vmatpush2.msra.mxu0 0.0
    %853 = vmatprep.subr.mxu0 0.0
    %854 = vmatpush2.msra.mxu0 0.0
    %855 = vmatprep.subr.mxu0 0.0
    %856 = vmatpush2.msra.mxu0 0.0
    %857 = vmatprep.subr.mxu0 0.0
    %858 = vmatpush2.msra.mxu0 0.0
    %859 = vmatprep.subr.mxu0 0.0
    %860 = vmatpush2.msra.mxu0 0.0
    %861 = vmatprep.subr.mxu0 0.0
    %862 = vmatpush2.msra.mxu0 0.0
    %863 = vmatprep.subr.mxu0 0.0
    %864 = vmatpush2.msra.mxu0 0.0
    %865 = vmatprep.subr.mxu0 0.0
    %866 = vmatpush2.msra.mxu0 0.0
    %867 = vmatprep.subr.mxu0 0.0
    %868 = vmatpush2.msra.mxu0 0.0
    %869 = vmatprep.subr.mxu0 0.0
    %870 = vmatpush2.msra.mxu0 0.0
    %871 = vmatprep.mubr.f32.mxu0 0.0
    %872 = vmatmul.mubr.f32.gmra.mxu0 %v793
    %v873 = vpop.f32.mrf.mxu0
    %v874 = vadd.f32 0.0, %v873
    %v875 = vpop.f32.mrf.mxu0
    %876 = vmatprep.mubr.f32.mxu0 0.0
    %877 = vmatmul.mubr.f32.gmra.mxu0 %v796
    %v878 = vpop.f32.mrf.mxu0
    %v879 = vadd.f32 0.0, %v878
    %v880 = vpop.f32.mrf.mxu0
    %881 = vmatprep.mubr.f32.mxu0 0.0
    %882 = vmatmul.mubr.f32.gmra.mxu0 %v799
    %v883 = vpop.f32.mrf.mxu0
    %v884 = vadd.f32 0.0, %v883
    %v885 = vpop.f32.mrf.mxu0
    %886 = vmatprep.mubr.f32.mxu0 0.0
    %887 = vmatmul.mubr.f32.gmra.mxu0 %v802
    %v888 = vpop.f32.mrf.mxu0
    %v889 = vadd.f32 0.0, %v888
    %v890 = vpop.f32.mrf.mxu0
    %891 = vdwg.mxu0
    %s892 = scalar_lea.vmem %s2, 224
    %v893 = vld [vmem:[%s892] sm:$0xff]
    %v894 = vld [vmem:[%s892 + $0x8] sm:$0xff]
    %v895 = vld [vmem:[%s892 + $0x10] sm:$0xff]
    %v896 = vld [vmem:[%s892 + $0x18] sm:$0xf]
    %s897 = sld [smem:[#allocation2 + $0x7]]
    %v898 = vstv %s897
    %v899 = vmul.f32 %v893, %v898
    %v900 = vmul.f32 %v894, %v898
    %v901 = vmul.f32 %v895, %v898
    %v902 = vmul.f32 %v896, %v898
    %s903 = scalar_lea.vmem %s3, 224
    %v904 = vld [vmem:[%s903] sm:$0xff]
    %v905 = vld [vmem:[%s903 + $0x8] sm:$0xff]
    %v906 = vld [vmem:[%s903 + $0x10] sm:$0xff]
    %v907 = vld [vmem:[%s903 + $0x18] sm:$0xf]
    %s908 = sld [smem:[#allocation4 + $0x7]]
    %v909 = vstv %s908
    %v910 = vmul.f32 %v904, %v909
    %v911 = vmul.f32 %v905, %v909
    %v912 = vmul.f32 %v906, %v909
    %v913 = vmul.f32 %v907, %v909
    %v914 = vadd.f32 %v899, %v910
    %v915 = vadd.f32 %v900, %v911
    %v916 = vadd.f32 %v901, %v912
    %v917 = vadd.f32 %v902, %v913
    %s918 = scalar_lea.vmem %s4, 224
    %v919 = vld [vmem:[%s918] sm:$0xff]
    %v920 = vld [vmem:[%s918 + $0x8] sm:$0xff]
    %v921 = vld [vmem:[%s918 + $0x10] sm:$0xff]
    %v922 = vld [vmem:[%s918 + $0x18] sm:$0xf]
    %v923 = vadd.f32 %v914, %v919
    %v924 = vadd.f32 %v915, %v920
    %v925 = vadd.f32 %v916, %v921
    %v926 = vadd.f32 %v917, %v922
    %v928 = vsel %vm115, %v923, 0
    %v931 = vsel %vm115, %v924, 0
    %v934 = vsel %vm115, %v925, 0
    %v937 = vsel %vm115, %v926, 0
    %v940 = vsel %vm128, %v889, 0
    %942 = vmatprep.subr.mxu0 0.0
    %943 = vmatpush1.msra.mxu0 0.0
    %944 = vmatprep.subr.mxu0 0.0
    %945 = vmatpush1.msra.mxu0 0.0
    %946 = vmatprep.subr.mxu0 0.0
    %947 = vmatpush1.msra.mxu0 0.0
    %948 = vmatprep.subr.mxu0 0.0
    %949 = vmatpush1.msra.mxu0 0.0
    %950 = vmatprep.subr.mxu0 0.0
    %951 = vmatpush1.msra.mxu0 0.0
    %952 = vmatprep.subr.mxu0 0.0
    %953 = vmatpush1.msra.mxu0 0.0
    %954 = vmatprep.subr.mxu0 0.0
    %955 = vmatpush1.msra.mxu0 0.0
    %956 = vmatprep.subr.mxu0 0.0
    %957 = vmatpush1.msra.mxu0 0.0
    %958 = vmatprep.subr.mxu0 0.0
    %959 = vmatpush1.msra.mxu0 0.0
    %960 = vmatprep.subr.mxu0 0.0
    %961 = vmatpush1.msra.mxu0 0.0
    %962 = vmatprep.subr.mxu0 0.0
    %963 = vmatpush1.msra.mxu0 0.0
    %964 = vmatprep.subr.mxu0 0.0
    %965 = vmatpush1.msra.mxu0 0.0
    %966 = vmatprep.subr.mxu0 0.0
    %967 = vmatpush1.msra.mxu0 %v940
    %968 = vmatprep.subr.mxu0 0.0
    %969 = vmatpush1.msra.mxu0 %v884
    %970 = vmatprep.subr.mxu0 0.0
    %971 = vmatpush1.msra.mxu0 %v879
    %972 = vmatprep.subr.mxu0 0.0
    %973 = vmatpush1.msra.mxu0 %v874
    %974 = vmatprep.subr.mxu0 0.0
    %975 = vmatpush2.msra.mxu0 0.0
    %976 = vmatprep.subr.mxu0 0.0
    %977 = vmatpush2.msra.mxu0 0.0
    %978 = vmatprep.subr.mxu0 0.0
    %979 = vmatpush2.msra.mxu0 0.0
    %980 = vmatprep.subr.mxu0 0.0
    %981 = vmatpush2.msra.mxu0 0.0
    %982 = vmatprep.subr.mxu0 0.0
    %983 = vmatpush2.msra.mxu0 0.0
    %984 = vmatprep.subr.mxu0 0.0
    %985 = vmatpush2.msra.mxu0 0.0
    %986 = vmatprep.subr.mxu0 0.0
    %987 = vmatpush2.msra.mxu0 0.0
    %988 = vmatprep.subr.mxu0 0.0
    %989 = vmatpush2.msra.mxu0 0.0
    %990 = vmatprep.subr.mxu0 0.0
    %991 = vmatpush2.msra.mxu0 0.0
    %992 = vmatprep.subr.mxu0 0.0
    %993 = vmatpush2.msra.mxu0 0.0
    %994 = vmatprep.subr.mxu0 0.0
    %995 = vmatpush2.msra.mxu0 0.0
    %996 = vmatprep.subr.mxu0 0.0
    %997 = vmatpush2.msra.mxu0 0.0
    %998 = vmatprep.subr.mxu0 0.0
    %999 = vmatpush2.msra.mxu0 0.0
    %1000 = vmatprep.subr.mxu0 0.0
    %1001 = vmatpush2.msra.mxu0 0.0
    %1002 = vmatprep.subr.mxu0 0.0
    %1003 = vmatpush2.msra.mxu0 0.0
    %1004 = vmatprep.subr.mxu0 0.0
    %1005 = vmatpush2.msra.mxu0 0.0
    %1006 = vmatprep.mubr.f32.mxu0 0.0
    %1007 = vmatmul.mubr.f32.gmra.mxu0 %v928
    %v1008 = vpop.f32.mrf.mxu0
    %v1009 = vadd.f32 0.0, %v1008
    %v1010 = vpop.f32.mrf.mxu0
    %1011 = vmatprep.mubr.f32.mxu0 0.0
    %1012 = vmatmul.mubr.f32.gmra.mxu0 %v931
    %v1013 = vpop.f32.mrf.mxu0
    %v1014 = vadd.f32 0.0, %v1013
    %v1015 = vpop.f32.mrf.mxu0
    %1016 = vmatprep.mubr.f32.mxu0 0.0
    %1017 = vmatmul.mubr.f32.gmra.mxu0 %v934
    %v1018 = vpop.f32.mrf.mxu0
    %v1019 = vadd.f32 0.0, %v1018
    %v1020 = vpop.f32.mrf.mxu0
    %1021 = vmatprep.mubr.f32.mxu0 0.0
    %1022 = vmatmul.mubr.f32.gmra.mxu0 %v937
    %v1023 = vpop.f32.mrf.mxu0
    %v1024 = vadd.f32 0.0, %v1023
    %v1025 = vpop.f32.mrf.mxu0
    %1026 = vdwg.mxu0
    %v1027 = vld [vmem:[%s5] sm:$0xff]
    %v1028 = vld [vmem:[%s5 + $0x8] sm:$0xff]
    %v1029 = vld [vmem:[%s5 + $0x10] sm:$0xff]
    %v1030 = vld [vmem:[%s5 + $0x18] sm:$0xf]
    %v1032 = vsel %vm115, %v1027, 0
    %v1035 = vsel %vm115, %v1028, 0
    %v1038 = vsel %vm115, %v1029, 0
    %v1041 = vsel %vm115, %v1030, 0
    %v1044 = vsel %vm115, %v1009, 0
    %v1047 = vsel %vm115, %v1014, 0
    %v1050 = vsel %vm115, %v1019, 0
    %v1053 = vsel %vm115, %v1024, 0
    %1055 = vmatprep.subr.mxu0 0.0
    %1056 = vmatpush1.xpose.msra.mxu0 0.0
    %1057 = vmatprep.subr.mxu0 0.0
    %1058 = vmatpush1.xpose.msra.mxu0 0.0
    %1059 = vmatprep.subr.mxu0 0.0
    %1060 = vmatpush1.xpose.msra.mxu0 0.0
    %1061 = vmatprep.subr.mxu0 0.0
    %1062 = vmatpush1.xpose.msra.mxu0 0.0
    %1063 = vmatprep.subr.mxu0 0.0
    %1064 = vmatpush1.xpose.msra.mxu0 0.0
    %1065 = vmatprep.subr.mxu0 0.0
    %1066 = vmatpush1.xpose.msra.mxu0 0.0
    %1067 = vmatprep.subr.mxu0 0.0
    %1068 = vmatpush1.xpose.msra.mxu0 0.0
    %1069 = vmatprep.subr.mxu0 0.0
    %1070 = vmatpush1.xpose.msra.mxu0 0.0
    %1071 = vmatprep.subr.mxu0 0.0
    %1072 = vmatpush1.xpose.msra.mxu0 0.0
    %1073 = vmatprep.subr.mxu0 0.0
    %1074 = vmatpush1.xpose.msra.mxu0 0.0
    %1075 = vmatprep.subr.mxu0 0.0
    %1076 = vmatpush1.xpose.msra.mxu0 0.0
    %1077 = vmatprep.subr.mxu0 0.0
    %1078 = vmatpush1.xpose.msra.mxu0 0.0
    %1079 = vmatprep.subr.mxu0 0.0
    %1080 = vmatpush1.xpose.msra.mxu0 %v1053
    %1081 = vmatprep.subr.mxu0 0.0
    %1082 = vmatpush1.xpose.msra.mxu0 %v1050
    %1083 = vmatprep.subr.mxu0 0.0
    %1084 = vmatpush1.xpose.msra.mxu0 %v1047
    %1085 = vmatprep.subr.mxu0 0.0
    %1086 = vmatpush1.xpose.msra.mxu0 %v1044
    %1087 = vmatprep.subr.mxu0 0.0
    %1088 = vmatpush2.xpose.msra.mxu0 0.0
    %1089 = vmatprep.subr.mxu0 0.0
    %1090 = vmatpush2.xpose.msra.mxu0 0.0
    %1091 = vmatprep.subr.mxu0 0.0
    %1092 = vmatpush2.xpose.msra.mxu0 0.0
    %1093 = vmatprep.subr.mxu0 0.0
    %1094 = vmatpush2.xpose.msra.mxu0 0.0
    %1095 = vmatprep.subr.mxu0 0.0
    %1096 = vmatpush2.xpose.msra.mxu0 0.0
    %1097 = vmatprep.subr.mxu0 0.0
    %1098 = vmatpush2.xpose.msra.mxu0 0.0
    %1099 = vmatprep.subr.mxu0 0.0
    %1100 = vmatpush2.xpose.msra.mxu0 0.0
    %1101 = vmatprep.subr.mxu0 0.0
    %1102 = vmatpush2.xpose.msra.mxu0 0.0
    %1103 = vmatprep.subr.mxu0 0.0
    %1104 = vmatpush2.xpose.msra.mxu0 0.0
    %1105 = vmatprep.subr.mxu0 0.0
    %1106 = vmatpush2.xpose.msra.mxu0 0.0
    %1107 = vmatprep.subr.mxu0 0.0
    %1108 = vmatpush2.xpose.msra.mxu0 0.0
    %1109 = vmatprep.subr.mxu0 0.0
    %1110 = vmatpush2.xpose.msra.mxu0 0.0
    %1111 = vmatprep.subr.mxu0 0.0
    %1112 = vmatpush2.xpose.msra.mxu0 0.0
    %1113 = vmatprep.subr.mxu0 0.0
    %1114 = vmatpush2.xpose.msra.mxu0 0.0
    %1115 = vmatprep.subr.mxu0 0.0
    %1116 = vmatpush2.xpose.msra.mxu0 0.0
    %1117 = vmatprep.subr.mxu0 0.0
    %1118 = vmatpush2.xpose.msra.mxu0 0.0
    %1119 = vmatprep.mubr.f32.mxu0 0.0
    %1120 = vmatmul.mubr.f32.gmra.mxu0 %v1032
    %v1121 = vpop.f32.mrf.mxu0
    %v1122 = vadd.f32 0.0, %v1121
    %v1123 = vpop.f32.mrf.mxu0
    %1124 = vmatprep.mubr.f32.mxu0 0.0
    %1125 = vmatmul.mubr.f32.gmra.mxu0 %v1035
    %v1126 = vpop.f32.mrf.mxu0
    %v1127 = vadd.f32 0.0, %v1126
    %v1128 = vpop.f32.mrf.mxu0
    %1129 = vmatprep.mubr.f32.mxu0 0.0
    %1130 = vmatmul.mubr.f32.gmra.mxu0 %v1038
    %v1131 = vpop.f32.mrf.mxu0
    %v1132 = vadd.f32 0.0, %v1131
    %v1133 = vpop.f32.mrf.mxu0
    %1134 = vmatprep.mubr.f32.mxu0 0.0
    %1135 = vmatmul.mubr.f32.gmra.mxu0 %v1041
    %v1136 = vpop.f32.mrf.mxu0
    %v1137 = vadd.f32 0.0, %v1136
    %v1138 = vpop.f32.mrf.mxu0
    %1139 = vdwg.mxu0
    %v1141 = vsel %vm128, %v1137, 0
    %1143 = vmatprep.subr.mxu0 0.0
    %1144 = vmatpush1.msra.mxu0 0.0
    %1145 = vmatprep.subr.mxu0 0.0
    %1146 = vmatpush1.msra.mxu0 0.0
    %1147 = vmatprep.subr.mxu0 0.0
    %1148 = vmatpush1.msra.mxu0 0.0
    %1149 = vmatprep.subr.mxu0 0.0
    %1150 = vmatpush1.msra.mxu0 0.0
    %1151 = vmatprep.subr.mxu0 0.0
    %1152 = vmatpush1.msra.mxu0 0.0
    %1153 = vmatprep.subr.mxu0 0.0
    %1154 = vmatpush1.msra.mxu0 0.0
    %1155 = vmatprep.subr.mxu0 0.0
    %1156 = vmatpush1.msra.mxu0 0.0
    %1157 = vmatprep.subr.mxu0 0.0
    %1158 = vmatpush1.msra.mxu0 0.0
    %1159 = vmatprep.subr.mxu0 0.0
    %1160 = vmatpush1.msra.mxu0 0.0
    %1161 = vmatprep.subr.mxu0 0.0
    %1162 = vmatpush1.msra.mxu0 0.0
    %1163 = vmatprep.subr.mxu0 0.0
    %1164 = vmatpush1.msra.mxu0 0.0
    %1165 = vmatprep.subr.mxu0 0.0
    %1166 = vmatpush1.msra.mxu0 0.0
    %1167 = vmatprep.subr.mxu0 0.0
    %1168 = vmatpush1.msra.mxu0 %v1141
    %1169 = vmatprep.subr.mxu0 0.0
    %1170 = vmatpush1.msra.mxu0 %v1132
    %1171 = vmatprep.subr.mxu0 0.0
    %1172 = vmatpush1.msra.mxu0 %v1127
    %1173 = vmatprep.subr.mxu0 0.0
    %1174 = vmatpush1.msra.mxu0 %v1122
    %1175 = vmatprep.subr.mxu0 0.0
    %1176 = vmatpush2.msra.mxu0 0.0
    %1177 = vmatprep.subr.mxu0 0.0
    %1178 = vmatpush2.msra.mxu0 0.0
    %1179 = vmatprep.subr.mxu0 0.0
    %1180 = vmatpush2.msra.mxu0 0.0
    %1181 = vmatprep.subr.mxu0 0.0
    %1182 = vmatpush2.msra.mxu0 0.0
    %1183 = vmatprep.subr.mxu0 0.0
    %1184 = vmatpush2.msra.mxu0 0.0
    %1185 = vmatprep.subr.mxu0 0.0
    %1186 = vmatpush2.msra.mxu0 0.0
    %1187 = vmatprep.subr.mxu0 0.0
    %1188 = vmatpush2.msra.mxu0 0.0
    %1189 = vmatprep.subr.mxu0 0.0
    %1190 = vmatpush2.msra.mxu0 0.0
    %1191 = vmatprep.subr.mxu0 0.0
    %1192 = vmatpush2.msra.mxu0 0.0
    %1193 = vmatprep.subr.mxu0 0.0
    %1194 = vmatpush2.msra.mxu0 0.0
    %1195 = vmatprep.subr.mxu0 0.0
    %1196 = vmatpush2.msra.mxu0 0.0
    %1197 = vmatprep.subr.mxu0 0.0
    %1198 = vmatpush2.msra.mxu0 0.0
    %1199 = vmatprep.subr.mxu0 0.0
    %1200 = vmatpush2.msra.mxu0 0.0
    %1201 = vmatprep.subr.mxu0 0.0
    %1202 = vmatpush2.msra.mxu0 0.0
    %1203 = vmatprep.subr.mxu0 0.0
    %1204 = vmatpush2.msra.mxu0 0.0
    %1205 = vmatprep.subr.mxu0 0.0
    %1206 = vmatpush2.msra.mxu0 0.0
    %1207 = vmatprep.mubr.f32.mxu0 0.0
    %1208 = vmatmul.mubr.f32.gmra.mxu0 %v1044
    %v1209 = vpop.f32.mrf.mxu0
    %v1210 = vadd.f32 0.0, %v1209
    %v1211 = vpop.f32.mrf.mxu0
    %1212 = vmatprep.mubr.f32.mxu0 0.0
    %1213 = vmatmul.mubr.f32.gmra.mxu0 %v1047
    %v1214 = vpop.f32.mrf.mxu0
    %v1215 = vadd.f32 0.0, %v1214
    %v1216 = vpop.f32.mrf.mxu0
    %1217 = vmatprep.mubr.f32.mxu0 0.0
    %1218 = vmatmul.mubr.f32.gmra.mxu0 %v1050
    %v1219 = vpop.f32.mrf.mxu0
    %v1220 = vadd.f32 0.0, %v1219
    %v1221 = vpop.f32.mrf.mxu0
    %1222 = vmatprep.mubr.f32.mxu0 0.0
    %1223 = vmatmul.mubr.f32.gmra.mxu0 %v1053
    %v1224 = vpop.f32.mrf.mxu0
    %v1225 = vadd.f32 0.0, %v1224
    %v1226 = vpop.f32.mrf.mxu0
    %1227 = vdwg.mxu0
    %1228 = vst.msk [vmem:[%s6] sm:$0xff] %vm115, %v1210
    %1229 = vst.msk [vmem:[%s6 + $0x8] sm:$0xff] %vm115, %v1215
    %1230 = vst.msk [vmem:[%s6 + $0x10] sm:$0xff] %vm115, %v1220
    %vm1231 = vcmask 224256
    %1232 = vst.msk [vmem:[%s6 + $0x18] sm:$0xf] %vm1231, %v1225
    %s1233 = scalar_lea.vmem %s5, 32
    %v1234 = vld [vmem:[%s1233] sm:$0xff]
    %v1235 = vld [vmem:[%s1233 + $0x8] sm:$0xff]
    %v1236 = vld [vmem:[%s1233 + $0x10] sm:$0xff]
    %v1237 = vld [vmem:[%s1233 + $0x18] sm:$0xf]
    %v1239 = vsel %vm115, %v1234, 0
    %v1242 = vsel %vm115, %v1235, 0
    %v1245 = vsel %vm115, %v1236, 0
    %v1248 = vsel %vm115, %v1237, 0
    %1250 = vmatprep.subr.mxu0 0.0
    %1251 = vmatpush1.xpose.msra.mxu0 0.0
    %1252 = vmatprep.subr.mxu0 0.0
    %1253 = vmatpush1.xpose.msra.mxu0 0.0
    %1254 = vmatprep.subr.mxu0 0.0
    %1255 = vmatpush1.xpose.msra.mxu0 0.0
    %1256 = vmatprep.subr.mxu0 0.0
    %1257 = vmatpush1.xpose.msra.mxu0 0.0
    %1258 = vmatprep.subr.mxu0 0.0
    %1259 = vmatpush1.xpose.msra.mxu0 0.0
    %1260 = vmatprep.subr.mxu0 0.0
    %1261 = vmatpush1.xpose.msra.mxu0 0.0
    %1262 = vmatprep.subr.mxu0 0.0
    %1263 = vmatpush1.xpose.msra.mxu0 0.0
    %1264 = vmatprep.subr.mxu0 0.0
    %1265 = vmatpush1.xpose.msra.mxu0 0.0
    %1266 = vmatprep.subr.mxu0 0.0
    %1267 = vmatpush1.xpose.msra.mxu0 0.0
    %1268 = vmatprep.subr.mxu0 0.0
    %1269 = vmatpush1.xpose.msra.mxu0 0.0
    %1270 = vmatprep.subr.mxu0 0.0
    %1271 = vmatpush1.xpose.msra.mxu0 0.0
    %1272 = vmatprep.subr.mxu0 0.0
    %1273 = vmatpush1.xpose.msra.mxu0 0.0
    %1274 = vmatprep.subr.mxu0 0.0
    %1275 = vmatpush1.xpose.msra.mxu0 %v1053
    %1276 = vmatprep.subr.mxu0 0.0
    %1277 = vmatpush1.xpose.msra.mxu0 %v1050
    %1278 = vmatprep.subr.mxu0 0.0
    %1279 = vmatpush1.xpose.msra.mxu0 %v1047
    %1280 = vmatprep.subr.mxu0 0.0
    %1281 = vmatpush1.xpose.msra.mxu0 %v1044
    %1282 = vmatprep.subr.mxu0 0.0
    %1283 = vmatpush2.xpose.msra.mxu0 0.0
    %1284 = vmatprep.subr.mxu0 0.0
    %1285 = vmatpush2.xpose.msra.mxu0 0.0
    %1286 = vmatprep.subr.mxu0 0.0
    %1287 = vmatpush2.xpose.msra.mxu0 0.0
    %1288 = vmatprep.subr.mxu0 0.0
    %1289 = vmatpush2.xpose.msra.mxu0 0.0
    %1290 = vmatprep.subr.mxu0 0.0
    %1291 = vmatpush2.xpose.msra.mxu0 0.0
    %1292 = vmatprep.subr.mxu0 0.0
    %1293 = vmatpush2.xpose.msra.mxu0 0.0
    %1294 = vmatprep.subr.mxu0 0.0
    %1295 = vmatpush2.xpose.msra.mxu0 0.0
    %1296 = vmatprep.subr.mxu0 0.0
    %1297 = vmatpush2.xpose.msra.mxu0 0.0
    %1298 = vmatprep.subr.mxu0 0.0
    %1299 = vmatpush2.xpose.msra.mxu0 0.0
    %1300 = vmatprep.subr.mxu0 0.0
    %1301 = vmatpush2.xpose.msra.mxu0 0.0
    %1302 = vmatprep.subr.mxu0 0.0
    %1303 = vmatpush2.xpose.msra.mxu0 0.0
    %1304 = vmatprep.subr.mxu0 0.0
    %1305 = vmatpush2.xpose.msra.mxu0 0.0
    %1306 = vmatprep.subr.mxu0 0.0
    %1307 = vmatpush2.xpose.msra.mxu0 0.0
    %1308 = vmatprep.subr.mxu0 0.0
    %1309 = vmatpush2.xpose.msra.mxu0 0.0
    %1310 = vmatprep.subr.mxu0 0.0
    %1311 = vmatpush2.xpose.msra.mxu0 0.0
    %1312 = vmatprep.subr.mxu0 0.0
    %1313 = vmatpush2.xpose.msra.mxu0 0.0
    %1314 = vmatprep.mubr.f32.mxu0 0.0
    %1315 = vmatmul.mubr.f32.gmra.mxu0 %v1239
    %v1316 = vpop.f32.mrf.mxu0
    %v1317 = vadd.f32 0.0, %v1316
    %v1318 = vpop.f32.mrf.mxu0
    %1319 = vmatprep.mubr.f32.mxu0 0.0
    %1320 = vmatmul.mubr.f32.gmra.mxu0 %v1242
    %v1321 = vpop.f32.mrf.mxu0
    %v1322 = vadd.f32 0.0, %v1321
    %v1323 = vpop.f32.mrf.mxu0
    %1324 = vmatprep.mubr.f32.mxu0 0.0
    %1325 = vmatmul.mubr.f32.gmra.mxu0 %v1245
    %v1326 = vpop.f32.mrf.mxu0
    %v1327 = vadd.f32 0.0, %v1326
    %v1328 = vpop.f32.mrf.mxu0
    %1329 = vmatprep.mubr.f32.mxu0 0.0
    %1330 = vmatmul.mubr.f32.gmra.mxu0 %v1248
    %v1331 = vpop.f32.mrf.mxu0
    %v1332 = vadd.f32 0.0, %v1331
    %v1333 = vpop.f32.mrf.mxu0
    %1334 = vdwg.mxu0
    %v1336 = vsel %vm128, %v1332, 0
    %1338 = vmatprep.subr.mxu0 0.0
    %1339 = vmatpush1.msra.mxu0 0.0
    %1340 = vmatprep.subr.mxu0 0.0
    %1341 = vmatpush1.msra.mxu0 0.0
    %1342 = vmatprep.subr.mxu0 0.0
    %1343 = vmatpush1.msra.mxu0 0.0
    %1344 = vmatprep.subr.mxu0 0.0
    %1345 = vmatpush1.msra.mxu0 0.0
    %1346 = vmatprep.subr.mxu0 0.0
    %1347 = vmatpush1.msra.mxu0 0.0
    %1348 = vmatprep.subr.mxu0 0.0
    %1349 = vmatpush1.msra.mxu0 0.0
    %1350 = vmatprep.subr.mxu0 0.0
    %1351 = vmatpush1.msra.mxu0 0.0
    %1352 = vmatprep.subr.mxu0 0.0
    %1353 = vmatpush1.msra.mxu0 0.0
    %1354 = vmatprep.subr.mxu0 0.0
    %1355 = vmatpush1.msra.mxu0 0.0
    %1356 = vmatprep.subr.mxu0 0.0
    %1357 = vmatpush1.msra.mxu0 0.0
    %1358 = vmatprep.subr.mxu0 0.0
    %1359 = vmatpush1.msra.mxu0 0.0
    %1360 = vmatprep.subr.mxu0 0.0
    %1361 = vmatpush1.msra.mxu0 0.0
    %1362 = vmatprep.subr.mxu0 0.0
    %1363 = vmatpush1.msra.mxu0 %v1336
    %1364 = vmatprep.subr.mxu0 0.0
    %1365 = vmatpush1.msra.mxu0 %v1327
    %1366 = vmatprep.subr.mxu0 0.0
    %1367 = vmatpush1.msra.mxu0 %v1322
    %1368 = vmatprep.subr.mxu0 0.0
    %1369 = vmatpush1.msra.mxu0 %v1317
    %1370 = vmatprep.subr.mxu0 0.0
    %1371 = vmatpush2.msra.mxu0 0.0
    %1372 = vmatprep.subr.mxu0 0.0
    %1373 = vmatpush2.msra.mxu0 0.0
    %1374 = vmatprep.subr.mxu0 0.0
    %1375 = vmatpush2.msra.mxu0 0.0
    %1376 = vmatprep.subr.mxu0 0.0
    %1377 = vmatpush2.msra.mxu0 0.0
    %1378 = vmatprep.subr.mxu0 0.0
    %1379 = vmatpush2.msra.mxu0 0.0
    %1380 = vmatprep.subr.mxu0 0.0
    %1381 = vmatpush2.msra.mxu0 0.0
    %1382 = vmatprep.subr.mxu0 0.0
    %1383 = vmatpush2.msra.mxu0 0.0
    %1384 = vmatprep.subr.mxu0 0.0
    %1385 = vmatpush2.msra.mxu0 0.0
    %1386 = vmatprep.subr.mxu0 0.0
    %1387 = vmatpush2.msra.mxu0 0.0
    %1388 = vmatprep.subr.mxu0 0.0
    %1389 = vmatpush2.msra.mxu0 0.0
    %1390 = vmatprep.subr.mxu0 0.0
    %1391 = vmatpush2.msra.mxu0 0.0
    %1392 = vmatprep.subr.mxu0 0.0
    %1393 = vmatpush2.msra.mxu0 0.0
    %1394 = vmatprep.subr.mxu0 0.0
    %1395 = vmatpush2.msra.mxu0 0.0
    %1396 = vmatprep.subr.mxu0 0.0
    %1397 = vmatpush2.msra.mxu0 0.0
    %1398 = vmatprep.subr.mxu0 0.0
    %1399 = vmatpush2.msra.mxu0 0.0
    %1400 = vmatprep.subr.mxu0 0.0
    %1401 = vmatpush2.msra.mxu0 0.0
    %1402 = vmatprep.mubr.f32.mxu0 0.0
    %1403 = vmatmul.mubr.f32.gmra.mxu0 %v1044
    %v1404 = vpop.f32.mrf.mxu0
    %v1405 = vadd.f32 0.0, %v1404
    %v1406 = vpop.f32.mrf.mxu0
    %1407 = vmatprep.mubr.f32.mxu0 0.0
    %1408 = vmatmul.mubr.f32.gmra.mxu0 %v1047
    %v1409 = vpop.f32.mrf.mxu0
    %v1410 = vadd.f32 0.0, %v1409
    %v1411 = vpop.f32.mrf.mxu0
    %1412 = vmatprep.mubr.f32.mxu0 0.0
    %1413 = vmatmul.mubr.f32.gmra.mxu0 %v1050
    %v1414 = vpop.f32.mrf.mxu0
    %v1415 = vadd.f32 0.0, %v1414
    %v1416 = vpop.f32.mrf.mxu0
    %1417 = vmatprep.mubr.f32.mxu0 0.0
    %1418 = vmatmul.mubr.f32.gmra.mxu0 %v1053
    %v1419 = vpop.f32.mrf.mxu0
    %v1420 = vadd.f32 0.0, %v1419
    %v1421 = vpop.f32.mrf.mxu0
    %1422 = vdwg.mxu0
    %s1423 = scalar_lea.vmem %s6, 32
    %1424 = vst.msk [vmem:[%s1423] sm:$0xff] %vm115, %v1405
    %1425 = vst.msk [vmem:[%s1423 + $0x8] sm:$0xff] %vm115, %v1410
    %1426 = vst.msk [vmem:[%s1423 + $0x10] sm:$0xff] %vm115, %v1415
    %1427 = vst.msk [vmem:[%s1423 + $0x18] sm:$0xf] %vm1231, %v1420
    // Predicated region
    $region34: #{dense_rbs_density_3d.1} parent=1 // pred_check
      _
    $region35: #{dense_rbs_density_3d.1} parent=1 // pred_check_branch
      %1429 = sbr.rel (0) target = $region37
    $region36: #{dense_rbs_density_3d.1} parent=1 // pred_region
      _
    $region37: #{dense_rbs_density_3d.1} parent=1 // pred_fallthru
      _
    // Predicated region
    $region38: #{dense_rbs_density_3d.1} parent=1 // pred_check
      _
    $region39: #{dense_rbs_density_3d.1} parent=1 // pred_check_branch
      %1431 = sbr.rel (0) target = $region41
    $region40: #{dense_rbs_density_3d.1} parent=1 // pred_region
      _
    $region41: #{dense_rbs_density_3d.1} parent=1 // pred_fallthru
      _
    %1432 = vsyncpa [#allocation3], 1
    %1433 = vsyncpa [#allocation5], 1

</llo_original>
